<compile_context>
chip_gen: v7x
topology: tpu7x:2x2x1
jax: 0.10.0
libtpu: 0.0.40
codegen_flags: <defaults>
</compile_context>

<pallas_src>
import jax
import jax.numpy as jnp
from jax.experimental import pallas as pl
from jax.experimental.pallas import tpu as pltpu

# ----- small, module-consistent hyperparameters -----
B = 2                              # batch
T = 8                              # sequence length (<= context_window)
N_EMBD = 32                        # embedding dim (n_embd)
NUM_HEADS = 4
HEAD_SIZE = N_EMBD // NUM_HEADS    # 8  (num_heads * head_size == n_embd, required by proj)
HD = NUM_HEADS * HEAD_SIZE         # 32


def _mha_kernel(x_ref, wqkv_ref, wp_ref, bp_ref, o_ref, cat_ref):
    """Single-invocation multi-head causal attention + output projection.

    x_ref    : (B*T, C)      folded input
    wqkv_ref : (C, 3*H*D)    fused [Wq | Wk | Wv]
    wp_ref   : (C, C)        output projection weight (y = x @ W convention)
    bp_ref   : (1, C)        output projection bias
    o_ref    : (B*T, C)      output
    cat_ref  : (B*T, C)      VMEM scratch holding concatenated head outputs
    """
    x = x_ref[...]                                            # (B*T, C) f32
    scale = jnp.float32(N_EMBD) ** -0.5

    # --- one fused projection for all heads and all of q/k/v ---
    qkv = jnp.dot(x, wqkv_ref[...], preferred_element_type=jnp.float32)  # (B*T, 3*H*D)
    q = qkv[:, 0 * HD:1 * HD]                                 # (B*T, H*D)
    k = qkv[:, 1 * HD:2 * HD]
    v = qkv[:, 2 * HD:3 * HD]

    row = jax.lax.broadcasted_iota(jnp.int32, (T, T), 0)
    col = jax.lax.broadcasted_iota(jnp.int32, (T, T), 1)
    causal = row >= col                                       # True where tril == 1

    # --- per (batch, head) score / softmax / weighted sum (static unroll: 2 x 4) ---
    for b in range(B):
        r0 = b * T
        for h in range(NUM_HEADS):
            c0 = h * HEAD_SIZE
            q_bh = q[r0:r0 + T, c0:c0 + HEAD_SIZE]            # (T, D)
            k_bh = k[r0:r0 + T, c0:c0 + HEAD_SIZE]            # (T, D)
            v_bh = v[r0:r0 + T, c0:c0 + HEAD_SIZE]            # (T, D)

            s = jnp.dot(q_bh, k_bh.T, preferred_element_type=jnp.float32) * scale  # (T, T)
            s = jnp.where(causal, s, -jnp.inf)                # masked_fill(tril==0, -inf)
            s = s - jnp.max(s, axis=-1, keepdims=True)
            p = jnp.exp(s)
            denom = jnp.sum(p, axis=-1, keepdims=True)
            p = p * pl.reciprocal(denom, approx=True)         # softmax(dim=-1), EUP recip
            # (dropout on p: identity in eval mode)

            # write head output into its static lane slice of the scratch (no concat)
            cat_ref[r0:r0 + T, c0:c0 + HEAD_SIZE] = jnp.dot(
                p, v_bh, preferred_element_type=jnp.float32)  # (T, D)

    # --- single output projection over all batch rows ---
    out = jnp.dot(cat_ref[...], wp_ref[...], preferred_element_type=jnp.float32) + bp_ref[...]
    # (output dropout: identity in eval mode)
    o_ref[...] = out.astype(o_ref.dtype)


def multi_head_attention(x, wq, wk, wv, wp, bp):
    """x: (B, T, C); wq/wk/wv: (H, C, D); wp: (C, C); bp: (1, C) -> (B, T, C)."""
    Bn, Tn, Cn = x.shape
    H, _, D = wq.shape
    hd = H * D

    # Fold per-head weights (H, C, D) -> (C, H*D) and stack q|k|v -> (C, 3*H*D).
    wq2 = jnp.transpose(wq, (1, 0, 2)).reshape(Cn, hd)
    wk2 = jnp.transpose(wk, (1, 0, 2)).reshape(Cn, hd)
    wv2 = jnp.transpose(wv, (1, 0, 2)).reshape(Cn, hd)
    wqkv = jnp.concatenate([wq2, wk2, wv2], axis=-1)          # (C, 3*H*D)

    x2 = x.reshape(Bn * Tn, Cn)                               # fold batch into rows

    out = pl.pallas_call(
        _mha_kernel,
        out_shape=jax.ShapeDtypeStruct((Bn * Tn, Cn), jnp.float32),
        grid_spec=pltpu.PrefetchScalarGridSpec(
            num_scalar_prefetch=0,
            grid=(1,),                                        # single invocation
            in_specs=[
                pl.BlockSpec((Bn * Tn, Cn), lambda i: (0, 0)),  # x (folded)
                pl.BlockSpec((Cn, 3 * hd), lambda i: (0, 0)),   # fused Wqkv
                pl.BlockSpec((Cn, Cn), lambda i: (0, 0)),       # wp
                pl.BlockSpec((1, Cn), lambda i: (0, 0)),        # bp
            ],
            out_specs=pl.BlockSpec((Bn * Tn, Cn), lambda i: (0, 0)),
            scratch_shapes=[pltpu.VMEM((Bn * Tn, Cn), jnp.float32)],  # head-concat scratch
        ),
        compiler_params=pltpu.CompilerParams(dimension_semantics=("arbitrary",)),
    )(x2, wqkv, wp, bp)
    return out.reshape(Bn, Tn, Cn)


def _reference(x, wq, wk, wv, wp, bp):
    """Pure-JAX reference for correctness check."""
    scale = jnp.float32(N_EMBD) ** -0.5
    q = jnp.einsum("btc,hcd->bhtd", x, wq)
    k = jnp.einsum("btc,hcd->bhtd", x, wk)
    v = jnp.einsum("btc,hcd->bhtd", x, wv)
    s = jnp.einsum("bhtd,bhsd->bhts", q, k) * scale
    tril = jnp.tril(jnp.ones((T, T), jnp.bool_))
    s = jnp.where(tril[None, None], s, -jnp.inf)
    p = jax.nn.softmax(s, axis=-1)
    o = jnp.einsum("bhts,bhsd->bhtd", p, v)                   # (B, H, T, D)
    cat = jnp.transpose(o, (0, 2, 1, 3)).reshape(x.shape[0], T, N_EMBD)
    return cat @ wp + bp[0]


if __name__ == "__main__":
    key = jax.random.PRNGKey(0)
    kx, kq, kk, kv, kp, kb = jax.random.split(key, 6)

    x = jax.random.normal(kx, (B, T, N_EMBD), jnp.float32)
    wq = 0.02 * jax.random.normal(kq, (NUM_HEADS, N_EMBD, HEAD_SIZE), jnp.float32)
    wk = 0.02 * jax.random.normal(kk, (NUM_HEADS, N_EMBD, HEAD_SIZE), jnp.float32)
    wv = 0.02 * jax.random.normal(kv, (NUM_HEADS, N_EMBD, HEAD_SIZE), jnp.float32)
    wp = 0.02 * jax.random.normal(kp, (N_EMBD, N_EMBD), jnp.float32)
    bp = 0.02 * jax.random.normal(kb, (1, N_EMBD), jnp.float32)

    out = multi_head_attention(x, wq, wk, wv, wp, bp)
    out = jax.block_until_ready(out)

    ref = jax.block_until_ready(_reference(x, wq, wk, wv, wp, bp))
    assert out.shape == (B, T, N_EMBD)
    # Tolerance slightly relaxed vs. exact-divide version because the softmax
    # normalization uses the EUP approximate reciprocal (per perf guidance).
    assert jnp.allclose(out, ref, atol=1e-3, rtol=1e-3), "mismatch vs reference"

    print("KERNEL_OK")
</pallas_src>

<mosaic_0001>
module attributes {stable_mosaic.version = 11 : i64} {
  func.func @_mha_kernel(%arg0: i32, %arg1: memref<16x32xf32, #tpu.memory_space<vmem>>, %arg2: memref<32x96xf32, #tpu.memory_space<vmem>>, %arg3: memref<32x32xf32, #tpu.memory_space<vmem>>, %arg4: memref<1x32xf32, #tpu.memory_space<vmem>>, %arg5: memref<16x32xf32, #tpu.memory_space<vmem>>, %arg6: memref<16x32xf32, #tpu.memory_space<vmem>>) attributes {dimension_semantics = [#tpu.dimension_semantics<arbitrary>], iteration_bounds = array<i64: 1>, scalar_prefetch = 0 : i64, scratch_operands = 1 : i64, tpu.core_type = #tpu.core_type<tc>, window_params = [{pipeline_mode = #tpu.pipeline_mode<synchronous>, transform_indices = @transform_0, window_bounds = array<i64: 16, 32>}, {pipeline_mode = #tpu.pipeline_mode<synchronous>, transform_indices = @transform_1, window_bounds = array<i64: 32, 96>}, {pipeline_mode = #tpu.pipeline_mode<synchronous>, transform_indices = @transform_2, window_bounds = array<i64: 32, 32>}, {pipeline_mode = #tpu.pipeline_mode<synchronous>, transform_indices = @transform_3, window_bounds = array<i64: 1, 32>}, {pipeline_mode = #tpu.pipeline_mode<synchronous>, transform_indices = @transform_4, window_bounds = array<i64: 16, 32>}]} {
    %c0 = arith.constant 0 : index
    %c0_0 = arith.constant 0 : index
    %0 = vector.load %arg1[%c0, %c0_0] : memref<16x32xf32, #tpu.memory_space<vmem>>, vector<16x32xf32>
    %cst = arith.constant 3.200000e+01 : f32
    %cst_1 = arith.constant -5.000000e-01 : f32
    %1 = math.powf %cst, %cst_1 : f32
    %c0_2 = arith.constant 0 : index
    %c0_3 = arith.constant 0 : index
    %2 = vector.load %arg2[%c0_2, %c0_3] : memref<32x96xf32, #tpu.memory_space<vmem>>, vector<32x96xf32>
    %cst_4 = arith.constant dense<0.000000e+00> : vector<16x96xf32>
    %3 = tpu.matmul %0, %2, %cst_4 {dimension_numbers = #tpu.dot_dimension_numbers<[1], [0], [0], [1], [0, 0, 1, 1], [], []>} : vector<16x32xf32>, vector<32x96xf32>, vector<16x96xf32> -> vector<16x96xf32>
    %4 = vector.extract_strided_slice %3 {offsets = [0, 0], sizes = [16, 32], strides = [1, 1]} : vector<16x96xf32> to vector<16x32xf32>
    %5 = vector.extract_strided_slice %3 {offsets = [0, 32], sizes = [16, 32], strides = [1, 1]} : vector<16x96xf32> to vector<16x32xf32>
    %6 = vector.extract_strided_slice %3 {offsets = [0, 64], sizes = [16, 32], strides = [1, 1]} : vector<16x96xf32> to vector<16x32xf32>
    %7 = tpu.iota {dimensions = array<i32: 0>} : vector<8x8xi32>
    %8 = tpu.iota {dimensions = array<i32: 1>} : vector<8x8xi32>
    %9 = arith.cmpi sge, %7, %8 : vector<8x8xi32>
    %10 = vector.extract_strided_slice %4 {offsets = [0, 0], sizes = [8, 8], strides = [1, 1]} : vector<16x32xf32> to vector<8x8xf32>
    %11 = vector.extract_strided_slice %5 {offsets = [0, 0], sizes = [8, 8], strides = [1, 1]} : vector<16x32xf32> to vector<8x8xf32>
    %12 = vector.extract_strided_slice %6 {offsets = [0, 0], sizes = [8, 8], strides = [1, 1]} : vector<16x32xf32> to vector<8x8xf32>
    %13 = tpu.transpose %11, [1, 0] : vector<8x8xf32> -> vector<8x8xf32>
    %cst_5 = arith.constant dense<0.000000e+00> : vector<8x8xf32>
    %14 = tpu.matmul %10, %13, %cst_5 {dimension_numbers = #tpu.dot_dimension_numbers<[1], [0], [0], [1], [0, 0, 1, 1], [], []>} : vector<8x8xf32>, vector<8x8xf32>, vector<8x8xf32> -> vector<8x8xf32>
    %15 = vector.broadcast %1 : f32 to vector<8x8xf32>
    %16 = arith.mulf %14, %15 : vector<8x8xf32>
    %cst_6 = arith.constant 0xFF800000 : f32
    %17 = vector.broadcast %cst_6 : f32 to vector<8x8xf32>
    %18 = arith.select %9, %16, %17 : vector<8x8xi1>, vector<8x8xf32>
    %cst_7 = arith.constant dense<0xFF800000> : vector<8xf32>
    %19 = vector.multi_reduction <maximumf>, %18, %cst_7 [1] : vector<8x8xf32> to vector<8xf32>
    %20 = vector.shape_cast %19 : vector<8xf32> to vector<8x1xf32>
    %21 = vector.broadcast %20 : vector<8x1xf32> to vector<8x8xf32>
    %22 = arith.subf %18, %21 : vector<8x8xf32>
    %23 = math.exp %22 : vector<8x8xf32>
    %cst_8 = arith.constant dense<0.000000e+00> : vector<8xf32>
    %24 = vector.multi_reduction <add>, %23, %cst_8 [1] : vector<8x8xf32> to vector<8xf32>
    %25 = vector.shape_cast %24 : vector<8xf32> to vector<8x1xf32>
    %26 = tpu.reciprocal %25 {approx = true} : vector<8x1xf32> -> vector<8x1xf32>
    %27 = vector.broadcast %26 : vector<8x1xf32> to vector<8x8xf32>
    %28 = arith.mulf %23, %27 : vector<8x8xf32>
    %cst_9 = arith.constant dense<0.000000e+00> : vector<8x8xf32>
    %29 = tpu.matmul %28, %12, %cst_9 {dimension_numbers = #tpu.dot_dimension_numbers<[1], [0], [0], [1], [0, 0, 1, 1], [], []>} : vector<8x8xf32>, vector<8x8xf32>, vector<8x8xf32> -> vector<8x8xf32>
    %c0_10 = arith.constant 0 : index
    %c0_11 = arith.constant 0 : index
    %30 = vector.load %arg6[%c0_10, %c0_11] : memref<16x32xf32, #tpu.memory_space<vmem>>, vector<8x8xf32>
    tpu.vector_store %arg6[%c0_10, %c0_11], %29 {strides = array<i32>} : memref<16x32xf32, #tpu.memory_space<vmem>>, vector<8x8xf32>,
    %31 = vector.extract_strided_slice %4 {offsets = [0, 8], sizes = [8, 8], strides = [1, 1]} : vector<16x32xf32> to vector<8x8xf32>
    %32 = vector.extract_strided_slice %5 {offsets = [0, 8], sizes = [8, 8], strides = [1, 1]} : vector<16x32xf32> to vector<8x8xf32>
    %33 = vector.extract_strided_slice %6 {offsets = [0, 8], sizes = [8, 8], strides = [1, 1]} : vector<16x32xf32> to vector<8x8xf32>
    %34 = tpu.transpose %32, [1, 0] : vector<8x8xf32> -> vector<8x8xf32>
    %cst_12 = arith.constant dense<0.000000e+00> : vector<8x8xf32>
    %35 = tpu.matmul %31, %34, %cst_12 {dimension_numbers = #tpu.dot_dimension_numbers<[1], [0], [0], [1], [0, 0, 1, 1], [], []>} : vector<8x8xf32>, vector<8x8xf32>, vector<8x8xf32> -> vector<8x8xf32>
    %36 = vector.broadcast %1 : f32 to vector<8x8xf32>
    %37 = arith.mulf %35, %36 : vector<8x8xf32>
    %cst_13 = arith.constant 0xFF800000 : f32
    %38 = vector.broadcast %cst_13 : f32 to vector<8x8xf32>
    %39 = arith.select %9, %37, %38 : vector<8x8xi1>, vector<8x8xf32>
    %cst_14 = arith.constant dense<0xFF800000> : vector<8xf32>
    %40 = vector.multi_reduction <maximumf>, %39, %cst_14 [1] : vector<8x8xf32> to vector<8xf32>
    %41 = vector.shape_cast %40 : vector<8xf32> to vector<8x1xf32>
    %42 = vector.broadcast %41 : vector<8x1xf32> to vector<8x8xf32>
    %43 = arith.subf %39, %42 : vector<8x8xf32>
    %44 = math.exp %43 : vector<8x8xf32>
    %cst_15 = arith.constant dense<0.000000e+00> : vector<8xf32>
    %45 = vector.multi_reduction <add>, %44, %cst_15 [1] : vector<8x8xf32> to vector<8xf32>
    %46 = vector.shape_cast %45 : vector<8xf32> to vector<8x1xf32>
    %47 = tpu.reciprocal %46 {approx = true} : vector<8x1xf32> -> vector<8x1xf32>
    %48 = vector.broadcast %47 : vector<8x1xf32> to vector<8x8xf32>
    %49 = arith.mulf %44, %48 : vector<8x8xf32>
    %cst_16 = arith.constant dense<0.000000e+00> : vector<8x8xf32>
    %50 = tpu.matmul %49, %33, %cst_16 {dimension_numbers = #tpu.dot_dimension_numbers<[1], [0], [0], [1], [0, 0, 1, 1], [], []>} : vector<8x8xf32>, vector<8x8xf32>, vector<8x8xf32> -> vector<8x8xf32>
    %c0_17 = arith.constant 0 : index
    %c8 = arith.constant 8 : index
    %51 = vector.load %arg6[%c0_17, %c8] : memref<16x32xf32, #tpu.memory_space<vmem>>, vector<8x8xf32>
    tpu.vector_store %arg6[%c0_17, %c8], %50 {strides = array<i32>} : memref<16x32xf32, #tpu.memory_space<vmem>>, vector<8x8xf32>,
    %52 = vector.extract_strided_slice %4 {offsets = [0, 16], sizes = [8, 8], strides = [1, 1]} : vector<16x32xf32> to vector<8x8xf32>
    %53 = vector.extract_strided_slice %5 {offsets = [0, 16], sizes = [8, 8], strides = [1, 1]} : vector<16x32xf32> to vector<8x8xf32>
    %54 = vector.extract_strided_slice %6 {offsets = [0, 16], sizes = [8, 8], strides = [1, 1]} : vector<16x32xf32> to vector<8x8xf32>
    %55 = tpu.transpose %53, [1, 0] : vector<8x8xf32> -> vector<8x8xf32>
    %cst_18 = arith.constant dense<0.000000e+00> : vector<8x8xf32>
    %56 = tpu.matmul %52, %55, %cst_18 {dimension_numbers = #tpu.dot_dimension_numbers<[1], [0], [0], [1], [0, 0, 1, 1], [], []>} : vector<8x8xf32>, vector<8x8xf32>, vector<8x8xf32> -> vector<8x8xf32>
    %57 = vector.broadcast %1 : f32 to vector<8x8xf32>
    %58 = arith.mulf %56, %57 : vector<8x8xf32>
    %cst_19 = arith.constant 0xFF800000 : f32
    %59 = vector.broadcast %cst_19 : f32 to vector<8x8xf32>
    %60 = arith.select %9, %58, %59 : vector<8x8xi1>, vector<8x8xf32>
    %cst_20 = arith.constant dense<0xFF800000> : vector<8xf32>
    %61 = vector.multi_reduction <maximumf>, %60, %cst_20 [1] : vector<8x8xf32> to vector<8xf32>
    %62 = vector.shape_cast %61 : vector<8xf32> to vector<8x1xf32>
    %63 = vector.broadcast %62 : vector<8x1xf32> to vector<8x8xf32>
    %64 = arith.subf %60, %63 : vector<8x8xf32>
    %65 = math.exp %64 : vector<8x8xf32>
    %cst_21 = arith.constant dense<0.000000e+00> : vector<8xf32>
    %66 = vector.multi_reduction <add>, %65, %cst_21 [1] : vector<8x8xf32> to vector<8xf32>
    %67 = vector.shape_cast %66 : vector<8xf32> to vector<8x1xf32>
    %68 = tpu.reciprocal %67 {approx = true} : vector<8x1xf32> -> vector<8x1xf32>
    %69 = vector.broadcast %68 : vector<8x1xf32> to vector<8x8xf32>
    %70 = arith.mulf %65, %69 : vector<8x8xf32>
    %cst_22 = arith.constant dense<0.000000e+00> : vector<8x8xf32>
    %71 = tpu.matmul %70, %54, %cst_22 {dimension_numbers = #tpu.dot_dimension_numbers<[1], [0], [0], [1], [0, 0, 1, 1], [], []>} : vector<8x8xf32>, vector<8x8xf32>, vector<8x8xf32> -> vector<8x8xf32>
    %c0_23 = arith.constant 0 : index
    %c16 = arith.constant 16 : index
    %72 = vector.load %arg6[%c0_23, %c16] : memref<16x32xf32, #tpu.memory_space<vmem>>, vector<8x8xf32>
    tpu.vector_store %arg6[%c0_23, %c16], %71 {strides = array<i32>} : memref<16x32xf32, #tpu.memory_space<vmem>>, vector<8x8xf32>,
    %73 = vector.extract_strided_slice %4 {offsets = [0, 24], sizes = [8, 8], strides = [1, 1]} : vector<16x32xf32> to vector<8x8xf32>
    %74 = vector.extract_strided_slice %5 {offsets = [0, 24], sizes = [8, 8], strides = [1, 1]} : vector<16x32xf32> to vector<8x8xf32>
    %75 = vector.extract_strided_slice %6 {offsets = [0, 24], sizes = [8, 8], strides = [1, 1]} : vector<16x32xf32> to vector<8x8xf32>
    %76 = tpu.transpose %74, [1, 0] : vector<8x8xf32> -> vector<8x8xf32>
    %cst_24 = arith.constant dense<0.000000e+00> : vector<8x8xf32>
    %77 = tpu.matmul %73, %76, %cst_24 {dimension_numbers = #tpu.dot_dimension_numbers<[1], [0], [0], [1], [0, 0, 1, 1], [], []>} : vector<8x8xf32>, vector<8x8xf32>, vector<8x8xf32> -> vector<8x8xf32>
    %78 = vector.broadcast %1 : f32 to vector<8x8xf32>
    %79 = arith.mulf %77, %78 : vector<8x8xf32>
    %cst_25 = arith.constant 0xFF800000 : f32
    %80 = vector.broadcast %cst_25 : f32 to vector<8x8xf32>
    %81 = arith.select %9, %79, %80 : vector<8x8xi1>, vector<8x8xf32>
    %cst_26 = arith.constant dense<0xFF800000> : vector<8xf32>
    %82 = vector.multi_reduction <maximumf>, %81, %cst_26 [1] : vector<8x8xf32> to vector<8xf32>
    %83 = vector.shape_cast %82 : vector<8xf32> to vector<8x1xf32>
    %84 = vector.broadcast %83 : vector<8x1xf32> to vector<8x8xf32>
    %85 = arith.subf %81, %84 : vector<8x8xf32>
    %86 = math.exp %85 : vector<8x8xf32>
    %cst_27 = arith.constant dense<0.000000e+00> : vector<8xf32>
    %87 = vector.multi_reduction <add>, %86, %cst_27 [1] : vector<8x8xf32> to vector<8xf32>
    %88 = vector.shape_cast %87 : vector<8xf32> to vector<8x1xf32>
    %89 = tpu.reciprocal %88 {approx = true} : vector<8x1xf32> -> vector<8x1xf32>
    %90 = vector.broadcast %89 : vector<8x1xf32> to vector<8x8xf32>
    %91 = arith.mulf %86, %90 : vector<8x8xf32>
    %cst_28 = arith.constant dense<0.000000e+00> : vector<8x8xf32>
    %92 = tpu.matmul %91, %75, %cst_28 {dimension_numbers = #tpu.dot_dimension_numbers<[1], [0], [0], [1], [0, 0, 1, 1], [], []>} : vector<8x8xf32>, vector<8x8xf32>, vector<8x8xf32> -> vector<8x8xf32>
    %c0_29 = arith.constant 0 : index
    %c24 = arith.constant 24 : index
    %93 = vector.load %arg6[%c0_29, %c24] : memref<16x32xf32, #tpu.memory_space<vmem>>, vector<8x8xf32>
    tpu.vector_store %arg6[%c0_29, %c24], %92 {strides = array<i32>} : memref<16x32xf32, #tpu.memory_space<vmem>>, vector<8x8xf32>,
    %94 = vector.extract_strided_slice %4 {offsets = [8, 0], sizes = [8, 8], strides = [1, 1]} : vector<16x32xf32> to vector<8x8xf32>
    %95 = vector.extract_strided_slice %5 {offsets = [8, 0], sizes = [8, 8], strides = [1, 1]} : vector<16x32xf32> to vector<8x8xf32>
    %96 = vector.extract_strided_slice %6 {offsets = [8, 0], sizes = [8, 8], strides = [1, 1]} : vector<16x32xf32> to vector<8x8xf32>
    %97 = tpu.transpose %95, [1, 0] : vector<8x8xf32> -> vector<8x8xf32>
    %cst_30 = arith.constant dense<0.000000e+00> : vector<8x8xf32>
    %98 = tpu.matmul %94, %97, %cst_30 {dimension_numbers = #tpu.dot_dimension_numbers<[1], [0], [0], [1], [0, 0, 1, 1], [], []>} : vector<8x8xf32>, vector<8x8xf32>, vector<8x8xf32> -> vector<8x8xf32>
    %99 = vector.broadcast %1 : f32 to vector<8x8xf32>
    %100 = arith.mulf %98, %99 : vector<8x8xf32>
    %cst_31 = arith.constant 0xFF800000 : f32
    %101 = vector.broadcast %cst_31 : f32 to vector<8x8xf32>
    %102 = arith.select %9, %100, %101 : vector<8x8xi1>, vector<8x8xf32>
    %cst_32 = arith.constant dense<0xFF800000> : vector<8xf32>
    %103 = vector.multi_reduction <maximumf>, %102, %cst_32 [1] : vector<8x8xf32> to vector<8xf32>
    %104 = vector.shape_cast %103 : vector<8xf32> to vector<8x1xf32>
    %105 = vector.broadcast %104 : vector<8x1xf32> to vector<8x8xf32>
    %106 = arith.subf %102, %105 : vector<8x8xf32>
    %107 = math.exp %106 : vector<8x8xf32>
    %cst_33 = arith.constant dense<0.000000e+00> : vector<8xf32>
    %108 = vector.multi_reduction <add>, %107, %cst_33 [1] : vector<8x8xf32> to vector<8xf32>
    %109 = vector.shape_cast %108 : vector<8xf32> to vector<8x1xf32>
    %110 = tpu.reciprocal %109 {approx = true} : vector<8x1xf32> -> vector<8x1xf32>
    %111 = vector.broadcast %110 : vector<8x1xf32> to vector<8x8xf32>
    %112 = arith.mulf %107, %111 : vector<8x8xf32>
    %cst_34 = arith.constant dense<0.000000e+00> : vector<8x8xf32>
    %113 = tpu.matmul %112, %96, %cst_34 {dimension_numbers = #tpu.dot_dimension_numbers<[1], [0], [0], [1], [0, 0, 1, 1], [], []>} : vector<8x8xf32>, vector<8x8xf32>, vector<8x8xf32> -> vector<8x8xf32>
    %c8_35 = arith.constant 8 : index
    %c0_36 = arith.constant 0 : index
    %114 = vector.load %arg6[%c8_35, %c0_36] : memref<16x32xf32, #tpu.memory_space<vmem>>, vector<8x8xf32>
    tpu.vector_store %arg6[%c8_35, %c0_36], %113 {strides = array<i32>} : memref<16x32xf32, #tpu.memory_space<vmem>>, vector<8x8xf32>,
    %115 = vector.extract_strided_slice %4 {offsets = [8, 8], sizes = [8, 8], strides = [1, 1]} : vector<16x32xf32> to vector<8x8xf32>
    %116 = vector.extract_strided_slice %5 {offsets = [8, 8], sizes = [8, 8], strides = [1, 1]} : vector<16x32xf32> to vector<8x8xf32>
    %117 = vector.extract_strided_slice %6 {offsets = [8, 8], sizes = [8, 8], strides = [1, 1]} : vector<16x32xf32> to vector<8x8xf32>
    %118 = tpu.transpose %116, [1, 0] : vector<8x8xf32> -> vector<8x8xf32>
    %cst_37 = arith.constant dense<0.000000e+00> : vector<8x8xf32>
    %119 = tpu.matmul %115, %118, %cst_37 {dimension_numbers = #tpu.dot_dimension_numbers<[1], [0], [0], [1], [0, 0, 1, 1], [], []>} : vector<8x8xf32>, vector<8x8xf32>, vector<8x8xf32> -> vector<8x8xf32>
    %120 = vector.broadcast %1 : f32 to vector<8x8xf32>
    %121 = arith.mulf %119, %120 : vector<8x8xf32>
    %cst_38 = arith.constant 0xFF800000 : f32
    %122 = vector.broadcast %cst_38 : f32 to vector<8x8xf32>
    %123 = arith.select %9, %121, %122 : vector<8x8xi1>, vector<8x8xf32>
    %cst_39 = arith.constant dense<0xFF800000> : vector<8xf32>
    %124 = vector.multi_reduction <maximumf>, %123, %cst_39 [1] : vector<8x8xf32> to vector<8xf32>
    %125 = vector.shape_cast %124 : vector<8xf32> to vector<8x1xf32>
    %126 = vector.broadcast %125 : vector<8x1xf32> to vector<8x8xf32>
    %127 = arith.subf %123, %126 : vector<8x8xf32>
    %128 = math.exp %127 : vector<8x8xf32>
    %cst_40 = arith.constant dense<0.000000e+00> : vector<8xf32>
    %129 = vector.multi_reduction <add>, %128, %cst_40 [1] : vector<8x8xf32> to vector<8xf32>
    %130 = vector.shape_cast %129 : vector<8xf32> to vector<8x1xf32>
    %131 = tpu.reciprocal %130 {approx = true} : vector<8x1xf32> -> vector<8x1xf32>
    %132 = vector.broadcast %131 : vector<8x1xf32> to vector<8x8xf32>
    %133 = arith.mulf %128, %132 : vector<8x8xf32>
    %cst_41 = arith.constant dense<0.000000e+00> : vector<8x8xf32>
    %134 = tpu.matmul %133, %117, %cst_41 {dimension_numbers = #tpu.dot_dimension_numbers<[1], [0], [0], [1], [0, 0, 1, 1], [], []>} : vector<8x8xf32>, vector<8x8xf32>, vector<8x8xf32> -> vector<8x8xf32>
    %c8_42 = arith.constant 8 : index
    %c8_43 = arith.constant 8 : index
    %135 = vector.load %arg6[%c8_42, %c8_43] : memref<16x32xf32, #tpu.memory_space<vmem>>, vector<8x8xf32>
    tpu.vector_store %arg6[%c8_42, %c8_43], %134 {strides = array<i32>} : memref<16x32xf32, #tpu.memory_space<vmem>>, vector<8x8xf32>,
    %136 = vector.extract_strided_slice %4 {offsets = [8, 16], sizes = [8, 8], strides = [1, 1]} : vector<16x32xf32> to vector<8x8xf32>
    %137 = vector.extract_strided_slice %5 {offsets = [8, 16], sizes = [8, 8], strides = [1, 1]} : vector<16x32xf32> to vector<8x8xf32>
    %138 = vector.extract_strided_slice %6 {offsets = [8, 16], sizes = [8, 8], strides = [1, 1]} : vector<16x32xf32> to vector<8x8xf32>
    %139 = tpu.transpose %137, [1, 0] : vector<8x8xf32> -> vector<8x8xf32>
    %cst_44 = arith.constant dense<0.000000e+00> : vector<8x8xf32>
    %140 = tpu.matmul %136, %139, %cst_44 {dimension_numbers = #tpu.dot_dimension_numbers<[1], [0], [0], [1], [0, 0, 1, 1], [], []>} : vector<8x8xf32>, vector<8x8xf32>, vector<8x8xf32> -> vector<8x8xf32>
    %141 = vector.broadcast %1 : f32 to vector<8x8xf32>
    %142 = arith.mulf %140, %141 : vector<8x8xf32>
    %cst_45 = arith.constant 0xFF800000 : f32
    %143 = vector.broadcast %cst_45 : f32 to vector<8x8xf32>
    %144 = arith.select %9, %142, %143 : vector<8x8xi1>, vector<8x8xf32>
    %cst_46 = arith.constant dense<0xFF800000> : vector<8xf32>
    %145 = vector.multi_reduction <maximumf>, %144, %cst_46 [1] : vector<8x8xf32> to vector<8xf32>
    %146 = vector.shape_cast %145 : vector<8xf32> to vector<8x1xf32>
    %147 = vector.broadcast %146 : vector<8x1xf32> to vector<8x8xf32>
    %148 = arith.subf %144, %147 : vector<8x8xf32>
    %149 = math.exp %148 : vector<8x8xf32>
    %cst_47 = arith.constant dense<0.000000e+00> : vector<8xf32>
    %150 = vector.multi_reduction <add>, %149, %cst_47 [1] : vector<8x8xf32> to vector<8xf32>
    %151 = vector.shape_cast %150 : vector<8xf32> to vector<8x1xf32>
    %152 = tpu.reciprocal %151 {approx = true} : vector<8x1xf32> -> vector<8x1xf32>
    %153 = vector.broadcast %152 : vector<8x1xf32> to vector<8x8xf32>
    %154 = arith.mulf %149, %153 : vector<8x8xf32>
    %cst_48 = arith.constant dense<0.000000e+00> : vector<8x8xf32>
    %155 = tpu.matmul %154, %138, %cst_48 {dimension_numbers = #tpu.dot_dimension_numbers<[1], [0], [0], [1], [0, 0, 1, 1], [], []>} : vector<8x8xf32>, vector<8x8xf32>, vector<8x8xf32> -> vector<8x8xf32>
    %c8_49 = arith.constant 8 : index
    %c16_50 = arith.constant 16 : index
    %156 = vector.load %arg6[%c8_49, %c16_50] : memref<16x32xf32, #tpu.memory_space<vmem>>, vector<8x8xf32>
    tpu.vector_store %arg6[%c8_49, %c16_50], %155 {strides = array<i32>} : memref<16x32xf32, #tpu.memory_space<vmem>>, vector<8x8xf32>,
    %157 = vector.extract_strided_slice %4 {offsets = [8, 24], sizes = [8, 8], strides = [1, 1]} : vector<16x32xf32> to vector<8x8xf32>
    %158 = vector.extract_strided_slice %5 {offsets = [8, 24], sizes = [8, 8], strides = [1, 1]} : vector<16x32xf32> to vector<8x8xf32>
    %159 = vector.extract_strided_slice %6 {offsets = [8, 24], sizes = [8, 8], strides = [1, 1]} : vector<16x32xf32> to vector<8x8xf32>
    %160 = tpu.transpose %158, [1, 0] : vector<8x8xf32> -> vector<8x8xf32>
    %cst_51 = arith.constant dense<0.000000e+00> : vector<8x8xf32>
    %161 = tpu.matmul %157, %160, %cst_51 {dimension_numbers = #tpu.dot_dimension_numbers<[1], [0], [0], [1], [0, 0, 1, 1], [], []>} : vector<8x8xf32>, vector<8x8xf32>, vector<8x8xf32> -> vector<8x8xf32>
    %162 = vector.broadcast %1 : f32 to vector<8x8xf32>
    %163 = arith.mulf %161, %162 : vector<8x8xf32>
    %cst_52 = arith.constant 0xFF800000 : f32
    %164 = vector.broadcast %cst_52 : f32 to vector<8x8xf32>
    %165 = arith.select %9, %163, %164 : vector<8x8xi1>, vector<8x8xf32>
    %cst_53 = arith.constant dense<0xFF800000> : vector<8xf32>
    %166 = vector.multi_reduction <maximumf>, %165, %cst_53 [1] : vector<8x8xf32> to vector<8xf32>
    %167 = vector.shape_cast %166 : vector<8xf32> to vector<8x1xf32>
    %168 = vector.broadcast %167 : vector<8x1xf32> to vector<8x8xf32>
    %169 = arith.subf %165, %168 : vector<8x8xf32>
    %170 = math.exp %169 : vector<8x8xf32>
    %cst_54 = arith.constant dense<0.000000e+00> : vector<8xf32>
    %171 = vector.multi_reduction <add>, %170, %cst_54 [1] : vector<8x8xf32> to vector<8xf32>
    %172 = vector.shape_cast %171 : vector<8xf32> to vector<8x1xf32>
    %173 = tpu.reciprocal %172 {approx = true} : vector<8x1xf32> -> vector<8x1xf32>
    %174 = vector.broadcast %173 : vector<8x1xf32> to vector<8x8xf32>
    %175 = arith.mulf %170, %174 : vector<8x8xf32>
    %cst_55 = arith.constant dense<0.000000e+00> : vector<8x8xf32>
    %176 = tpu.matmul %175, %159, %cst_55 {dimension_numbers = #tpu.dot_dimension_numbers<[1], [0], [0], [1], [0, 0, 1, 1], [], []>} : vector<8x8xf32>, vector<8x8xf32>, vector<8x8xf32> -> vector<8x8xf32>
    %c8_56 = arith.constant 8 : index
    %c24_57 = arith.constant 24 : index
    %177 = vector.load %arg6[%c8_56, %c24_57] : memref<16x32xf32, #tpu.memory_space<vmem>>, vector<8x8xf32>
    tpu.vector_store %arg6[%c8_56, %c24_57], %176 {strides = array<i32>} : memref<16x32xf32, #tpu.memory_space<vmem>>, vector<8x8xf32>,
    %c0_58 = arith.constant 0 : index
    %c0_59 = arith.constant 0 : index
    %178 = vector.load %arg6[%c0_58, %c0_59] : memref<16x32xf32, #tpu.memory_space<vmem>>, vector<16x32xf32>
    %c0_60 = arith.constant 0 : index
    %c0_61 = arith.constant 0 : index
    %179 = vector.load %arg3[%c0_60, %c0_61] : memref<32x32xf32, #tpu.memory_space<vmem>>, vector<32x32xf32>
    %cst_62 = arith.constant dense<0.000000e+00> : vector<16x32xf32>
    %180 = tpu.matmul %178, %179, %cst_62 {dimension_numbers = #tpu.dot_dimension_numbers<[1], [0], [0], [1], [0, 0, 1, 1], [], []>} : vector<16x32xf32>, vector<32x32xf32>, vector<16x32xf32> -> vector<16x32xf32>
    %c0_63 = arith.constant 0 : index
    %c0_64 = arith.constant 0 : index
    %181 = vector.load %arg4[%c0_63, %c0_64] : memref<1x32xf32, #tpu.memory_space<vmem>>, vector<1x32xf32>
    %182 = vector.broadcast %181 : vector<1x32xf32> to vector<16x32xf32>
    %183 = arith.addf %180, %182 : vector<16x32xf32>
    %c0_65 = arith.constant 0 : index
    %c0_66 = arith.constant 0 : index
    %184 = vector.load %arg5[%c0_65, %c0_66] : memref<16x32xf32, #tpu.memory_space<vmem>>, vector<16x32xf32>
    tpu.vector_store %arg5[%c0_65, %c0_66], %183 {strides = array<i32>} : memref<16x32xf32, #tpu.memory_space<vmem>>, vector<16x32xf32>,
    return
  }
  func.func @transform_0(%arg0: i32) -> (i32, i32) {
    %c0_i32 = arith.constant 0 : i32
    %c0_i32_0 = arith.constant 0 : i32
    %c0_i32_1 = arith.constant 0 : i32
    return %c0_i32, %c0_i32_0 : i32, i32
  }
  func.func @transform_1(%arg0: i32) -> (i32, i32) {
    %c0_i32 = arith.constant 0 : i32
    %c0_i32_0 = arith.constant 0 : i32
    %c0_i32_1 = arith.constant 0 : i32
    return %c0_i32, %c0_i32_0 : i32, i32
  }
  func.func @transform_2(%arg0: i32) -> (i32, i32) {
    %c0_i32 = arith.constant 0 : i32
    %c0_i32_0 = arith.constant 0 : i32
    %c0_i32_1 = arith.constant 0 : i32
    return %c0_i32, %c0_i32_0 : i32, i32
  }
  func.func @transform_3(%arg0: i32) -> (i32, i32) {
    %c0_i32 = arith.constant 0 : i32
    %c0_i32_0 = arith.constant 0 : i32
    %c0_i32_1 = arith.constant 0 : i32
    return %c0_i32, %c0_i32_0 : i32, i32
  }
  func.func @transform_4(%arg0: i32) -> (i32, i32) {
    %c0_i32 = arith.constant 0 : i32
    %c0_i32_0 = arith.constant 0 : i32
    %c0_i32_1 = arith.constant 0 : i32
    return %c0_i32, %c0_i32_0 : i32, i32
  }
}

</mosaic_0001>

<llo_original>
// kernel: tpu_custom_call.1
$region0: #{tpu_custom_call.1}
  #allocation0 [shape = 'u32[]', space=smem, size = 0x4, offset = 0x4, fixed_abs, tag = 'smem constant byte address 0x4 - core index']
  #allocation1 [shape = 'u32[144,128]{1,0:T(1,128)}', space=vmem, size = 0x12000, scoped, tag = 'internal scratch']
  #allocation2 [shape = 'f32[16,32]{1,0:T(8,128)}', space=vmem, size = 0x2000, scoped, tag = 'scratch operand']
  %s0 = inlined_call_operand.hbm [shape: f32[16,32], index: 0, kind: input, shape index: {}]
  %s1 = inlined_call_operand.hbm [shape: f32[32,96], index: 1, kind: input, shape index: {}]
  %s2 = inlined_call_operand.hbm [shape: f32[32,32], index: 2, kind: input, shape index: {}]
  %s3 = inlined_call_operand.vmem [shape: f32[1,32], index: 3, kind: input, shape index: {}]
  %s4 = inlined_call_operand.hbm [shape: f32[16,32], index: 4, kind: output, shape index: {}]
  %s5 = sld [smem:[#allocation0]]
  $region38: #{tpu_custom_call.1} parent=0
    _
  %s7 = ssub.s32 1, %s5
  %s8 = scalar_select 0, %s7, %s5
  $region1: #{tpu_custom_call.1} parent=0
    #allocation3 [shape = 'u8[8192]{0}', space=vmem, size = 0x2000, scoped, tag = 'input window, operand 0, single buffered']
    #allocation4 [shape = 's32[1]{0}', space=sflag, size = 0x4, scoped, tag = 'scoped memory for tpu_custom_call.1']
    #allocation5 [shape = 's32[1]{0}', space=sflag, size = 0x4, scoped, tag = 'scoped memory for tpu_custom_call.1']
    #allocation6 [shape = 'u8[16384]{0}', space=vmem, size = 0x4000, scoped, tag = 'input window, operand 1, single buffered']
    #allocation7 [shape = 's32[1]{0}', space=sflag, size = 0x4, scoped, tag = 'scoped memory for tpu_custom_call.1']
    #allocation8 [shape = 'u8[16384]{0}', space=vmem, size = 0x4000, scoped, tag = 'input window, operand 2, single buffered']
    #allocation9 [shape = 'u8[8192]{0}', space=vmem, size = 0x2000, scoped, tag = 'output window, operand 0, single buffered']
    %9 = vsyncpa [#allocation4], 0
    %10 = vsyncpa [#allocation7], 0
    %11 = vsyncpa [#allocation5], 0
    // Predicated region
    $region2: #{tpu_custom_call.1} parent=1 // pred_check
      _
    $region3: #{tpu_custom_call.1} parent=1 // pred_check_branch
      %13 = sbr.rel (0) target = $region5
    $region4: #{tpu_custom_call.1} parent=1 // pred_region
      %s15 = ssub.s32 256, 256
      %16 = vsyncadd [#allocation4], %s15
      %s17 = sshll.u32 [#allocation3], 4
      %s18 = int_to_ptr.vmem [resolvable:$true] %s17
      %23 = dma.hbm_to_vmem [thread:$0]  %s0, 256, %s18, [#allocation4], 128, 128, 8
    $region5: #{tpu_custom_call.1} parent=1 // pred_fallthru
      _
    // Predicated region
    $region6: #{tpu_custom_call.1} parent=1 // pred_check
      _
    $region7: #{tpu_custom_call.1} parent=1 // pred_check_branch
      %25 = sbr.rel (0) target = $region9
    $region8: #{tpu_custom_call.1} parent=1 // pred_region
      %s27 = ssub.s32 512, 512
      %28 = vsyncadd [#allocation7], %s27
      %s29 = sshll.u32 [#allocation6], 4
      %s30 = int_to_ptr.vmem [resolvable:$true] %s29
      %35 = dma.hbm_to_vmem [thread:$0]  %s1, 512, %s30, [#allocation7], 128, 128, 8
    $region9: #{tpu_custom_call.1} parent=1 // pred_fallthru
      _
    // Predicated region
    $region10: #{tpu_custom_call.1} parent=1 // pred_check
      _
    $region11: #{tpu_custom_call.1} parent=1 // pred_check_branch
      %37 = sbr.rel (0) target = $region13
    $region12: #{tpu_custom_call.1} parent=1 // pred_region
      %s39 = ssub.s32 512, 512
      %40 = vsyncadd [#allocation7], %s39
      %s41 = sshll.u32 [#allocation8], 4
      %s42 = int_to_ptr.vmem [resolvable:$true] %s41
      %47 = dma.hbm_to_vmem [thread:$0]  %s2, 512, %s42, [#allocation7], 128, 128, 8
    $region13: #{tpu_custom_call.1} parent=1 // pred_fallthru
      _
    // Predicated region
    $region14: #{tpu_custom_call.1} parent=1 // pred_check
      _
    $region15: #{tpu_custom_call.1} parent=1 // pred_check_branch
      %49 = sbr.rel (0) target = $region17
    $region16: #{tpu_custom_call.1} parent=1 // pred_region
      _
    $region17: #{tpu_custom_call.1} parent=1 // pred_fallthru
      _
    // Predicated region
    $region18: #{tpu_custom_call.1} parent=1 // pred_check
      _
    $region19: #{tpu_custom_call.1} parent=1 // pred_check_branch
      %51 = sbr.rel (0) target = $region21
    $region20: #{tpu_custom_call.1} parent=1 // pred_region
      %52 = dma.done [#allocation4], 256
    $region21: #{tpu_custom_call.1} parent=1 // pred_fallthru
      _
    // Predicated region
    $region22: #{tpu_custom_call.1} parent=1 // pred_check
      _
    $region23: #{tpu_custom_call.1} parent=1 // pred_check_branch
      %54 = sbr.rel (0) target = $region25
    $region24: #{tpu_custom_call.1} parent=1 // pred_region
      %55 = dma.done [#allocation7], 512
    $region25: #{tpu_custom_call.1} parent=1 // pred_fallthru
      _
    // Predicated region
    $region26: #{tpu_custom_call.1} parent=1 // pred_check
      _
    $region27: #{tpu_custom_call.1} parent=1 // pred_check_branch
      %57 = sbr.rel (0) target = $region29
    $region28: #{tpu_custom_call.1} parent=1 // pred_region
      %58 = dma.done [#allocation7], 512
    $region29: #{tpu_custom_call.1} parent=1 // pred_fallthru
      _
    %v59 = vld [vmem:[#allocation3] sm:$0xff]
    %v60 = vld [vmem:[#allocation3 + $0x8] sm:$0xff]
    %v61 = vld [vmem:[#allocation6] sm:$0xff]
    %v62 = vld [vmem:[#allocation6 + $0x8] sm:$0xff]
    %v63 = vld [vmem:[#allocation6 + $0x10] sm:$0xff]
    %v64 = vld [vmem:[#allocation6 + $0x18] sm:$0xff]
    %vm65 = vcmask 261120
    %v67 = vsel %vm65, %v59, 0
    %v70 = vsel %vm65, %v60, 0
    %72 = vmatprep.subr.mxu0 0.0
    %73 = vmatpush1.msra.mxu0 %v61
    %74 = vmatprep.subr.mxu0 0.0
    %75 = vmatpush1.msra.mxu0 %v62
    %76 = vmatprep.subr.mxu0 0.0
    %77 = vmatpush1.msra.mxu0 %v63
    %78 = vmatprep.subr.mxu0 0.0
    %79 = vmatpush1.msra.mxu0 %v64
    %80 = vmatprep.subr.mxu0 0.0
    %81 = vmatpush1.msra.mxu0 0.0
    %82 = vmatprep.subr.mxu0 0.0
    %83 = vmatpush1.msra.mxu0 0.0
    %84 = vmatprep.subr.mxu0 0.0
    %85 = vmatpush1.msra.mxu0 0.0
    %86 = vmatprep.subr.mxu0 0.0
    %87 = vmatpush1.msra.mxu0 0.0
    %88 = vmatprep.subr.mxu0 0.0
    %89 = vmatpush1.msra.mxu0 0.0
    %90 = vmatprep.subr.mxu0 0.0
    %91 = vmatpush1.msra.mxu0 0.0
    %92 = vmatprep.subr.mxu0 0.0
    %93 = vmatpush1.msra.mxu0 0.0
    %94 = vmatprep.subr.mxu0 0.0
    %95 = vmatpush1.msra.mxu0 0.0
    %96 = vmatprep.subr.mxu0 0.0
    %97 = vmatpush1.msra.mxu0 0.0
    %98 = vmatprep.subr.mxu0 0.0
    %99 = vmatpush1.msra.mxu0 0.0
    %100 = vmatprep.subr.mxu0 0.0
    %101 = vmatpush1.msra.mxu0 0.0
    %102 = vmatprep.subr.mxu0 0.0
    %103 = vmatpush1.msra.mxu0 0.0
    %104 = vmatprep.subr.mxu0 0.0
    %105 = vmatpush1.msra.mxu0 0.0
    %106 = vmatprep.subr.mxu0 0.0
    %107 = vmatpush1.msra.mxu0 0.0
    %108 = vmatprep.subr.mxu0 0.0
    %109 = vmatpush1.msra.mxu0 0.0
    %110 = vmatprep.subr.mxu0 0.0
    %111 = vmatpush1.msra.mxu0 0.0
    %112 = vmatprep.subr.mxu0 0.0
    %113 = vmatpush1.msra.mxu0 0.0
    %114 = vmatprep.subr.mxu0 0.0
    %115 = vmatpush1.msra.mxu0 0.0
    %116 = vmatprep.subr.mxu0 0.0
    %117 = vmatpush1.msra.mxu0 0.0
    %118 = vmatprep.subr.mxu0 0.0
    %119 = vmatpush1.msra.mxu0 0.0
    %120 = vmatprep.subr.mxu0 0.0
    %121 = vmatpush1.msra.mxu0 0.0
    %122 = vmatprep.subr.mxu0 0.0
    %123 = vmatpush1.msra.mxu0 0.0
    %124 = vmatprep.subr.mxu0 0.0
    %125 = vmatpush1.msra.mxu0 0.0
    %126 = vmatprep.subr.mxu0 0.0
    %127 = vmatpush1.msra.mxu0 0.0
    %128 = vmatprep.subr.mxu0 0.0
    %129 = vmatpush1.msra.mxu0 0.0
    %130 = vmatprep.subr.mxu0 0.0
    %131 = vmatpush1.msra.mxu0 0.0
    %132 = vmatprep.subr.mxu0 0.0
    %133 = vmatpush1.msra.mxu0 0.0
    %134 = vmatprep.subr.mxu0 0.0
    %135 = vmatpush1.msra.mxu0 0.0
    %136 = vmatprep.mubr.f32.mxu0 0.0
    %137 = vmatmul.mubr.f32.gmra.mrb[0].mxu0 %v67
    %v138 = vpop.f32.mrb[0].mxu0
    %v139 = vadd.f32 0.0, %v138
    %v140 = vpop.f32.mrb[0].mxu0
    %141 = vmatprep.mubr.f32.mxu0 0.0
    %142 = vmatmul.mubr.f32.gmra.mrb[0].mxu0 %v70
    %v143 = vpop.f32.mrb[0].mxu0
    %v144 = vadd.f32 0.0, %v143
    %v145 = vpop.f32.mrb[0].mxu0
    %146 = vdwg.mxu0
    %v147 = vlaneseq
    %v148 = vshrl.u32 %v147, 7
    %v149 = vlaneseq
    %v150 = vand.u32 %v149, 127
    %vm151 = vcmp.ge.s32.totalorder %v148, %v150
    %153 = vrot.lane.b32.xlu0 %v139, 96
    %v154 = vpop.permute.xlu0 %153
    %vm155 = vcmask 64512
    %v156 = vsel %vm155, %v139, 0
    %v158 = vsel %vm155, %v154, 0
    %160 = vmatprep.subr.mxu0 0.0
    %161 = vmatpush1.xpose.msra.mxu0 %v158
    %162 = vmatprep.subr.mxu0 0.0
    %163 = vmatpush1.xpose.msra.mxu0 0.0
    %164 = vmatprep.subr.mxu0 0.0
    %165 = vmatpush1.xpose.msra.mxu0 0.0
    %166 = vmatprep.subr.mxu0 0.0
    %167 = vmatpush1.xpose.msra.mxu0 0.0
    %168 = vmatprep.subr.mxu0 0.0
    %169 = vmatpush1.xpose.msra.mxu0 0.0
    %170 = vmatprep.subr.mxu0 0.0
    %171 = vmatpush1.xpose.msra.mxu0 0.0
    %172 = vmatprep.subr.mxu0 0.0
    %173 = vmatpush1.xpose.msra.mxu0 0.0
    %174 = vmatprep.subr.mxu0 0.0
    %175 = vmatpush1.xpose.msra.mxu0 0.0
    %176 = vmatprep.subr.mxu0 0.0
    %177 = vmatpush1.xpose.msra.mxu0 0.0
    %178 = vmatprep.subr.mxu0 0.0
    %179 = vmatpush1.xpose.msra.mxu0 0.0
    %180 = vmatprep.subr.mxu0 0.0
    %181 = vmatpush1.xpose.msra.mxu0 0.0
    %182 = vmatprep.subr.mxu0 0.0
    %183 = vmatpush1.xpose.msra.mxu0 0.0
    %184 = vmatprep.subr.mxu0 0.0
    %185 = vmatpush1.xpose.msra.mxu0 0.0
    %186 = vmatprep.subr.mxu0 0.0
    %187 = vmatpush1.xpose.msra.mxu0 0.0
    %188 = vmatprep.subr.mxu0 0.0
    %189 = vmatpush1.xpose.msra.mxu0 0.0
    %190 = vmatprep.subr.mxu0 0.0
    %191 = vmatpush1.xpose.msra.mxu0 0.0
    %192 = vmatprep.subr.mxu0 0.0
    %193 = vmatpush1.xpose.msra.mxu0 0.0
    %194 = vmatprep.subr.mxu0 0.0
    %195 = vmatpush1.xpose.msra.mxu0 0.0
    %196 = vmatprep.subr.mxu0 0.0
    %197 = vmatpush1.xpose.msra.mxu0 0.0
    %198 = vmatprep.subr.mxu0 0.0
    %199 = vmatpush1.xpose.msra.mxu0 0.0
    %200 = vmatprep.subr.mxu0 0.0
    %201 = vmatpush1.xpose.msra.mxu0 0.0
    %202 = vmatprep.subr.mxu0 0.0
    %203 = vmatpush1.xpose.msra.mxu0 0.0
    %204 = vmatprep.subr.mxu0 0.0
    %205 = vmatpush1.xpose.msra.mxu0 0.0
    %206 = vmatprep.subr.mxu0 0.0
    %207 = vmatpush1.xpose.msra.mxu0 0.0
    %208 = vmatprep.subr.mxu0 0.0
    %209 = vmatpush1.xpose.msra.mxu0 0.0
    %210 = vmatprep.subr.mxu0 0.0
    %211 = vmatpush1.xpose.msra.mxu0 0.0
    %212 = vmatprep.subr.mxu0 0.0
    %213 = vmatpush1.xpose.msra.mxu0 0.0
    %214 = vmatprep.subr.mxu0 0.0
    %215 = vmatpush1.xpose.msra.mxu0 0.0
    %216 = vmatprep.subr.mxu0 0.0
    %217 = vmatpush1.xpose.msra.mxu0 0.0
    %218 = vmatprep.subr.mxu0 0.0
    %219 = vmatpush1.xpose.msra.mxu0 0.0
    %220 = vmatprep.subr.mxu0 0.0
    %221 = vmatpush1.xpose.msra.mxu0 0.0
    %222 = vmatprep.subr.mxu0 0.0
    %223 = vmatpush1.xpose.msra.mxu0 0.0
    %224 = vmatprep.mubr.f32.mxu0 0.0
    %225 = vmatmul.mubr.f32.gmra.mrb[0].mxu0 %v156
    %v226 = vpop.f32.mrb[0].mxu0
    %v227 = vadd.f32 0.0, %v226
    %v228 = vpop.f32.mrb[0].mxu0
    %229 = vdwg.mxu0
    %v230 = vmul.f32 %v227, 0.17677669
    %v231 = vsel %vm151, %v230, -inf
    %v232 = vsel %vm155, %v231, -inf
    %233 = vmax.xlane.f32.xlu0 %v232
    %v234 = vpop.xlane.xlu0 %233
    %v235 = vsub.f32 %v231, %v234
    %v236 = vmul.f32 %v235, 1.442695
    %v237 = vpow.pop %v236
    %v238 = vsel %vm155, %v237, 0.0
    %239 = vadd.xlane.f32.xlu0 %v238
    %v240 = vpop.xlane.xlu0 %239
    %v241 = vrcp.pop %v240
    %v242 = vmul.f32 %v237, %v241
    %243 = vrot.lane.b32.xlu0 %v139, 64
    %v244 = vpop.permute.xlu0 %243
    %v247 = vsel %vm155, %v242, 0
    %249 = vmatprep.subr.mxu0 0.0
    %250 = vmatpush1.msra.mxu0 %v244
    %251 = vmatprep.subr.mxu0 0.0
    %252 = vmatpush1.msra.mxu0 0.0
    %253 = vmatprep.subr.mxu0 0.0
    %254 = vmatpush1.msra.mxu0 0.0
    %255 = vmatprep.subr.mxu0 0.0
    %256 = vmatpush1.msra.mxu0 0.0
    %257 = vmatprep.subr.mxu0 0.0
    %258 = vmatpush1.msra.mxu0 0.0
    %259 = vmatprep.subr.mxu0 0.0
    %260 = vmatpush1.msra.mxu0 0.0
    %261 = vmatprep.subr.mxu0 0.0
    %262 = vmatpush1.msra.mxu0 0.0
    %263 = vmatprep.subr.mxu0 0.0
    %264 = vmatpush1.msra.mxu0 0.0
    %265 = vmatprep.subr.mxu0 0.0
    %266 = vmatpush1.msra.mxu0 0.0
    %267 = vmatprep.subr.mxu0 0.0
    %268 = vmatpush1.msra.mxu0 0.0
    %269 = vmatprep.subr.mxu0 0.0
    %270 = vmatpush1.msra.mxu0 0.0
    %271 = vmatprep.subr.mxu0 0.0
    %272 = vmatpush1.msra.mxu0 0.0
    %273 = vmatprep.subr.mxu0 0.0
    %274 = vmatpush1.msra.mxu0 0.0
    %275 = vmatprep.subr.mxu0 0.0
    %276 = vmatpush1.msra.mxu0 0.0
    %277 = vmatprep.subr.mxu0 0.0
    %278 = vmatpush1.msra.mxu0 0.0
    %279 = vmatprep.subr.mxu0 0.0
    %280 = vmatpush1.msra.mxu0 0.0
    %281 = vmatprep.subr.mxu0 0.0
    %282 = vmatpush1.msra.mxu0 0.0
    %283 = vmatprep.subr.mxu0 0.0
    %284 = vmatpush1.msra.mxu0 0.0
    %285 = vmatprep.subr.mxu0 0.0
    %286 = vmatpush1.msra.mxu0 0.0
    %287 = vmatprep.subr.mxu0 0.0
    %288 = vmatpush1.msra.mxu0 0.0
    %289 = vmatprep.subr.mxu0 0.0
    %290 = vmatpush1.msra.mxu0 0.0
    %291 = vmatprep.subr.mxu0 0.0
    %292 = vmatpush1.msra.mxu0 0.0
    %293 = vmatprep.subr.mxu0 0.0
    %294 = vmatpush1.msra.mxu0 0.0
    %295 = vmatprep.subr.mxu0 0.0
    %296 = vmatpush1.msra.mxu0 0.0
    %297 = vmatprep.subr.mxu0 0.0
    %298 = vmatpush1.msra.mxu0 0.0
    %299 = vmatprep.subr.mxu0 0.0
    %300 = vmatpush1.msra.mxu0 0.0
    %301 = vmatprep.subr.mxu0 0.0
    %302 = vmatpush1.msra.mxu0 0.0
    %303 = vmatprep.subr.mxu0 0.0
    %304 = vmatpush1.msra.mxu0 0.0
    %305 = vmatprep.subr.mxu0 0.0
    %306 = vmatpush1.msra.mxu0 0.0
    %307 = vmatprep.subr.mxu0 0.0
    %308 = vmatpush1.msra.mxu0 0.0
    %309 = vmatprep.subr.mxu0 0.0
    %310 = vmatpush1.msra.mxu0 0.0
    %311 = vmatprep.subr.mxu0 0.0
    %312 = vmatpush1.msra.mxu0 0.0
    %313 = vmatprep.mubr.f32.mxu0 0.0
    %314 = vmatmul.mubr.f32.gmra.mrb[0].mxu0 %v247
    %v315 = vpop.f32.mrb[0].mxu0
    %v316 = vadd.f32 0.0, %v315
    %v317 = vpop.f32.mrb[0].mxu0
    %318 = vdwg.mxu0
    %319 = vst.msk [vmem:[#allocation2] sm:$0xff] %vm155, %v316
    %320 = vrot.lane.b32.xlu0 %v139, 120
    %v321 = vpop.permute.xlu0 %320
    %322 = vrot.lane.b32.xlu0 %v139, 88
    %v323 = vpop.permute.xlu0 %322
    %v324 = vsel %vm155, %v321, 0
    %v326 = vsel %vm155, %v323, 0
    %328 = vmatprep.subr.mxu0 0.0
    %329 = vmatpush1.xpose.msra.mxu0 %v326
    %330 = vmatprep.subr.mxu0 0.0
    %331 = vmatpush1.xpose.msra.mxu0 0.0
    %332 = vmatprep.subr.mxu0 0.0
    %333 = vmatpush1.xpose.msra.mxu0 0.0
    %334 = vmatprep.subr.mxu0 0.0
    %335 = vmatpush1.xpose.msra.mxu0 0.0
    %336 = vmatprep.subr.mxu0 0.0
    %337 = vmatpush1.xpose.msra.mxu0 0.0
    %338 = vmatprep.subr.mxu0 0.0
    %339 = vmatpush1.xpose.msra.mxu0 0.0
    %340 = vmatprep.subr.mxu0 0.0
    %341 = vmatpush1.xpose.msra.mxu0 0.0
    %342 = vmatprep.subr.mxu0 0.0
    %343 = vmatpush1.xpose.msra.mxu0 0.0
    %344 = vmatprep.subr.mxu0 0.0
    %345 = vmatpush1.xpose.msra.mxu0 0.0
    %346 = vmatprep.subr.mxu0 0.0
    %347 = vmatpush1.xpose.msra.mxu0 0.0
    %348 = vmatprep.subr.mxu0 0.0
    %349 = vmatpush1.xpose.msra.mxu0 0.0
    %350 = vmatprep.subr.mxu0 0.0
    %351 = vmatpush1.xpose.msra.mxu0 0.0
    %352 = vmatprep.subr.mxu0 0.0
    %353 = vmatpush1.xpose.msra.mxu0 0.0
    %354 = vmatprep.subr.mxu0 0.0
    %355 = vmatpush1.xpose.msra.mxu0 0.0
    %356 = vmatprep.subr.mxu0 0.0
    %357 = vmatpush1.xpose.msra.mxu0 0.0
    %358 = vmatprep.subr.mxu0 0.0
    %359 = vmatpush1.xpose.msra.mxu0 0.0
    %360 = vmatprep.subr.mxu0 0.0
    %361 = vmatpush1.xpose.msra.mxu0 0.0
    %362 = vmatprep.subr.mxu0 0.0
    %363 = vmatpush1.xpose.msra.mxu0 0.0
    %364 = vmatprep.subr.mxu0 0.0
    %365 = vmatpush1.xpose.msra.mxu0 0.0
    %366 = vmatprep.subr.mxu0 0.0
    %367 = vmatpush1.xpose.msra.mxu0 0.0
    %368 = vmatprep.subr.mxu0 0.0
    %369 = vmatpush1.xpose.msra.mxu0 0.0
    %370 = vmatprep.subr.mxu0 0.0
    %371 = vmatpush1.xpose.msra.mxu0 0.0
    %372 = vmatprep.subr.mxu0 0.0
    %373 = vmatpush1.xpose.msra.mxu0 0.0
    %374 = vmatprep.subr.mxu0 0.0
    %375 = vmatpush1.xpose.msra.mxu0 0.0
    %376 = vmatprep.subr.mxu0 0.0
    %377 = vmatpush1.xpose.msra.mxu0 0.0
    %378 = vmatprep.subr.mxu0 0.0
    %379 = vmatpush1.xpose.msra.mxu0 0.0
    %380 = vmatprep.subr.mxu0 0.0
    %381 = vmatpush1.xpose.msra.mxu0 0.0
    %382 = vmatprep.subr.mxu0 0.0
    %383 = vmatpush1.xpose.msra.mxu0 0.0
    %384 = vmatprep.subr.mxu0 0.0
    %385 = vmatpush1.xpose.msra.mxu0 0.0
    %386 = vmatprep.subr.mxu0 0.0
    %387 = vmatpush1.xpose.msra.mxu0 0.0
    %388 = vmatprep.subr.mxu0 0.0
    %389 = vmatpush1.xpose.msra.mxu0 0.0
    %390 = vmatprep.subr.mxu0 0.0
    %391 = vmatpush1.xpose.msra.mxu0 0.0
    %392 = vmatprep.mubr.f32.mxu0 0.0
    %393 = vmatmul.mubr.f32.gmra.mrb[0].mxu0 %v324
    %v394 = vpop.f32.mrb[0].mxu0
    %v395 = vadd.f32 0.0, %v394
    %v396 = vpop.f32.mrb[0].mxu0
    %397 = vdwg.mxu0
    %v398 = vmul.f32 %v395, 0.17677669
    %v399 = vsel %vm151, %v398, -inf
    %v400 = vsel %vm155, %v399, -inf
    %401 = vmax.xlane.f32.xlu0 %v400
    %v402 = vpop.xlane.xlu0 %401
    %v403 = vsub.f32 %v399, %v402
    %v404 = vmul.f32 %v403, 1.442695
    %v405 = vpow.pop %v404
    %v406 = vsel %vm155, %v405, 0.0
    %407 = vadd.xlane.f32.xlu0 %v406
    %v408 = vpop.xlane.xlu0 %407
    %v409 = vrcp.pop %v408
    %v410 = vmul.f32 %v405, %v409
    %411 = vrot.lane.b32.xlu0 %v139, 56
    %v412 = vpop.permute.xlu0 %411
    %v415 = vsel %vm155, %v410, 0
    %417 = vmatprep.subr.mxu0 0.0
    %418 = vmatpush1.msra.mxu0 %v412
    %419 = vmatprep.subr.mxu0 0.0
    %420 = vmatpush1.msra.mxu0 0.0
    %421 = vmatprep.subr.mxu0 0.0
    %422 = vmatpush1.msra.mxu0 0.0
    %423 = vmatprep.subr.mxu0 0.0
    %424 = vmatpush1.msra.mxu0 0.0
    %425 = vmatprep.subr.mxu0 0.0
    %426 = vmatpush1.msra.mxu0 0.0
    %427 = vmatprep.subr.mxu0 0.0
    %428 = vmatpush1.msra.mxu0 0.0
    %429 = vmatprep.subr.mxu0 0.0
    %430 = vmatpush1.msra.mxu0 0.0
    %431 = vmatprep.subr.mxu0 0.0
    %432 = vmatpush1.msra.mxu0 0.0
    %433 = vmatprep.subr.mxu0 0.0
    %434 = vmatpush1.msra.mxu0 0.0
    %435 = vmatprep.subr.mxu0 0.0
    %436 = vmatpush1.msra.mxu0 0.0
    %437 = vmatprep.subr.mxu0 0.0
    %438 = vmatpush1.msra.mxu0 0.0
    %439 = vmatprep.subr.mxu0 0.0
    %440 = vmatpush1.msra.mxu0 0.0
    %441 = vmatprep.subr.mxu0 0.0
    %442 = vmatpush1.msra.mxu0 0.0
    %443 = vmatprep.subr.mxu0 0.0
    %444 = vmatpush1.msra.mxu0 0.0
    %445 = vmatprep.subr.mxu0 0.0
    %446 = vmatpush1.msra.mxu0 0.0
    %447 = vmatprep.subr.mxu0 0.0
    %448 = vmatpush1.msra.mxu0 0.0
    %449 = vmatprep.subr.mxu0 0.0
    %450 = vmatpush1.msra.mxu0 0.0
    %451 = vmatprep.subr.mxu0 0.0
    %452 = vmatpush1.msra.mxu0 0.0
    %453 = vmatprep.subr.mxu0 0.0
    %454 = vmatpush1.msra.mxu0 0.0
    %455 = vmatprep.subr.mxu0 0.0
    %456 = vmatpush1.msra.mxu0 0.0
    %457 = vmatprep.subr.mxu0 0.0
    %458 = vmatpush1.msra.mxu0 0.0
    %459 = vmatprep.subr.mxu0 0.0
    %460 = vmatpush1.msra.mxu0 0.0
    %461 = vmatprep.subr.mxu0 0.0
    %462 = vmatpush1.msra.mxu0 0.0
    %463 = vmatprep.subr.mxu0 0.0
    %464 = vmatpush1.msra.mxu0 0.0
    %465 = vmatprep.subr.mxu0 0.0
    %466 = vmatpush1.msra.mxu0 0.0
    %467 = vmatprep.subr.mxu0 0.0
    %468 = vmatpush1.msra.mxu0 0.0
    %469 = vmatprep.subr.mxu0 0.0
    %470 = vmatpush1.msra.mxu0 0.0
    %471 = vmatprep.subr.mxu0 0.0
    %472 = vmatpush1.msra.mxu0 0.0
    %473 = vmatprep.subr.mxu0 0.0
    %474 = vmatpush1.msra.mxu0 0.0
    %475 = vmatprep.subr.mxu0 0.0
    %476 = vmatpush1.msra.mxu0 0.0
    %477 = vmatprep.subr.mxu0 0.0
    %478 = vmatpush1.msra.mxu0 0.0
    %479 = vmatprep.subr.mxu0 0.0
    %480 = vmatpush1.msra.mxu0 0.0
    %481 = vmatprep.mubr.f32.mxu0 0.0
    %482 = vmatmul.mubr.f32.gmra.mrb[0].mxu0 %v415
    %v483 = vpop.f32.mrb[0].mxu0
    %v484 = vadd.f32 0.0, %v483
    %v485 = vpop.f32.mrb[0].mxu0
    %486 = vdwg.mxu0
    %488 = vrot.lane.b32.xlu0 %v484, 8
    %v489 = vpop.permute.xlu0 %488
    %vm491 = vcmask 130112
    %492 = vst.msk [vmem:[#allocation2] sm:$0xff] %vm491, %v489
    %493 = vrot.lane.b32.xlu0 %v139, 112
    %v494 = vpop.permute.xlu0 %493
    %495 = vrot.lane.b32.xlu0 %v139, 80
    %v496 = vpop.permute.xlu0 %495
    %v497 = vsel %vm155, %v494, 0
    %v499 = vsel %vm155, %v496, 0
    %501 = vmatprep.subr.mxu0 0.0
    %502 = vmatpush1.xpose.msra.mxu0 %v499
    %503 = vmatprep.subr.mxu0 0.0
    %504 = vmatpush1.xpose.msra.mxu0 0.0
    %505 = vmatprep.subr.mxu0 0.0
    %506 = vmatpush1.xpose.msra.mxu0 0.0
    %507 = vmatprep.subr.mxu0 0.0
    %508 = vmatpush1.xpose.msra.mxu0 0.0
    %509 = vmatprep.subr.mxu0 0.0
    %510 = vmatpush1.xpose.msra.mxu0 0.0
    %511 = vmatprep.subr.mxu0 0.0
    %512 = vmatpush1.xpose.msra.mxu0 0.0
    %513 = vmatprep.subr.mxu0 0.0
    %514 = vmatpush1.xpose.msra.mxu0 0.0
    %515 = vmatprep.subr.mxu0 0.0
    %516 = vmatpush1.xpose.msra.mxu0 0.0
    %517 = vmatprep.subr.mxu0 0.0
    %518 = vmatpush1.xpose.msra.mxu0 0.0
    %519 = vmatprep.subr.mxu0 0.0
    %520 = vmatpush1.xpose.msra.mxu0 0.0
    %521 = vmatprep.subr.mxu0 0.0
    %522 = vmatpush1.xpose.msra.mxu0 0.0
    %523 = vmatprep.subr.mxu0 0.0
    %524 = vmatpush1.xpose.msra.mxu0 0.0
    %525 = vmatprep.subr.mxu0 0.0
    %526 = vmatpush1.xpose.msra.mxu0 0.0
    %527 = vmatprep.subr.mxu0 0.0
    %528 = vmatpush1.xpose.msra.mxu0 0.0
    %529 = vmatprep.subr.mxu0 0.0
    %530 = vmatpush1.xpose.msra.mxu0 0.0
    %531 = vmatprep.subr.mxu0 0.0
    %532 = vmatpush1.xpose.msra.mxu0 0.0
    %533 = vmatprep.subr.mxu0 0.0
    %534 = vmatpush1.xpose.msra.mxu0 0.0
    %535 = vmatprep.subr.mxu0 0.0
    %536 = vmatpush1.xpose.msra.mxu0 0.0
    %537 = vmatprep.subr.mxu0 0.0
    %538 = vmatpush1.xpose.msra.mxu0 0.0
    %539 = vmatprep.subr.mxu0 0.0
    %540 = vmatpush1.xpose.msra.mxu0 0.0
    %541 = vmatprep.subr.mxu0 0.0
    %542 = vmatpush1.xpose.msra.mxu0 0.0
    %543 = vmatprep.subr.mxu0 0.0
    %544 = vmatpush1.xpose.msra.mxu0 0.0
    %545 = vmatprep.subr.mxu0 0.0
    %546 = vmatpush1.xpose.msra.mxu0 0.0
    %547 = vmatprep.subr.mxu0 0.0
    %548 = vmatpush1.xpose.msra.mxu0 0.0
    %549 = vmatprep.subr.mxu0 0.0
    %550 = vmatpush1.xpose.msra.mxu0 0.0
    %551 = vmatprep.subr.mxu0 0.0
    %552 = vmatpush1.xpose.msra.mxu0 0.0
    %553 = vmatprep.subr.mxu0 0.0
    %554 = vmatpush1.xpose.msra.mxu0 0.0
    %555 = vmatprep.subr.mxu0 0.0
    %556 = vmatpush1.xpose.msra.mxu0 0.0
    %557 = vmatprep.subr.mxu0 0.0
    %558 = vmatpush1.xpose.msra.mxu0 0.0
    %559 = vmatprep.subr.mxu0 0.0
    %560 = vmatpush1.xpose.msra.mxu0 0.0
    %561 = vmatprep.subr.mxu0 0.0
    %562 = vmatpush1.xpose.msra.mxu0 0.0
    %563 = vmatprep.subr.mxu0 0.0
    %564 = vmatpush1.xpose.msra.mxu0 0.0
    %565 = vmatprep.mubr.f32.mxu0 0.0
    %566 = vmatmul.mubr.f32.gmra.mrb[0].mxu0 %v497
    %v567 = vpop.f32.mrb[0].mxu0
    %v568 = vadd.f32 0.0, %v567
    %v569 = vpop.f32.mrb[0].mxu0
    %570 = vdwg.mxu0
    %v571 = vmul.f32 %v568, 0.17677669
    %v572 = vsel %vm151, %v571, -inf
    %v573 = vsel %vm155, %v572, -inf
    %574 = vmax.xlane.f32.xlu0 %v573
    %v575 = vpop.xlane.xlu0 %574
    %v576 = vsub.f32 %v572, %v575
    %v577 = vmul.f32 %v576, 1.442695
    %v578 = vpow.pop %v577
    %v579 = vsel %vm155, %v578, 0.0
    %580 = vadd.xlane.f32.xlu0 %v579
    %v581 = vpop.xlane.xlu0 %580
    %v582 = vrcp.pop %v581
    %v583 = vmul.f32 %v578, %v582
    %584 = vrot.lane.b32.xlu0 %v139, 48
    %v585 = vpop.permute.xlu0 %584
    %v588 = vsel %vm155, %v583, 0
    %590 = vmatprep.subr.mxu0 0.0
    %591 = vmatpush1.msra.mxu0 %v585
    %592 = vmatprep.subr.mxu0 0.0
    %593 = vmatpush1.msra.mxu0 0.0
    %594 = vmatprep.subr.mxu0 0.0
    %595 = vmatpush1.msra.mxu0 0.0
    %596 = vmatprep.subr.mxu0 0.0
    %597 = vmatpush1.msra.mxu0 0.0
    %598 = vmatprep.subr.mxu0 0.0
    %599 = vmatpush1.msra.mxu0 0.0
    %600 = vmatprep.subr.mxu0 0.0
    %601 = vmatpush1.msra.mxu0 0.0
    %602 = vmatprep.subr.mxu0 0.0
    %603 = vmatpush1.msra.mxu0 0.0
    %604 = vmatprep.subr.mxu0 0.0
    %605 = vmatpush1.msra.mxu0 0.0
    %606 = vmatprep.subr.mxu0 0.0
    %607 = vmatpush1.msra.mxu0 0.0
    %608 = vmatprep.subr.mxu0 0.0
    %609 = vmatpush1.msra.mxu0 0.0
    %610 = vmatprep.subr.mxu0 0.0
    %611 = vmatpush1.msra.mxu0 0.0
    %612 = vmatprep.subr.mxu0 0.0
    %613 = vmatpush1.msra.mxu0 0.0
    %614 = vmatprep.subr.mxu0 0.0
    %615 = vmatpush1.msra.mxu0 0.0
    %616 = vmatprep.subr.mxu0 0.0
    %617 = vmatpush1.msra.mxu0 0.0
    %618 = vmatprep.subr.mxu0 0.0
    %619 = vmatpush1.msra.mxu0 0.0
    %620 = vmatprep.subr.mxu0 0.0
    %621 = vmatpush1.msra.mxu0 0.0
    %622 = vmatprep.subr.mxu0 0.0
    %623 = vmatpush1.msra.mxu0 0.0
    %624 = vmatprep.subr.mxu0 0.0
    %625 = vmatpush1.msra.mxu0 0.0
    %626 = vmatprep.subr.mxu0 0.0
    %627 = vmatpush1.msra.mxu0 0.0
    %628 = vmatprep.subr.mxu0 0.0
    %629 = vmatpush1.msra.mxu0 0.0
    %630 = vmatprep.subr.mxu0 0.0
    %631 = vmatpush1.msra.mxu0 0.0
    %632 = vmatprep.subr.mxu0 0.0
    %633 = vmatpush1.msra.mxu0 0.0
    %634 = vmatprep.subr.mxu0 0.0
    %635 = vmatpush1.msra.mxu0 0.0
    %636 = vmatprep.subr.mxu0 0.0
    %637 = vmatpush1.msra.mxu0 0.0
    %638 = vmatprep.subr.mxu0 0.0
    %639 = vmatpush1.msra.mxu0 0.0
    %640 = vmatprep.subr.mxu0 0.0
    %641 = vmatpush1.msra.mxu0 0.0
    %642 = vmatprep.subr.mxu0 0.0
    %643 = vmatpush1.msra.mxu0 0.0
    %644 = vmatprep.subr.mxu0 0.0
    %645 = vmatpush1.msra.mxu0 0.0
    %646 = vmatprep.subr.mxu0 0.0
    %647 = vmatpush1.msra.mxu0 0.0
    %648 = vmatprep.subr.mxu0 0.0
    %649 = vmatpush1.msra.mxu0 0.0
    %650 = vmatprep.subr.mxu0 0.0
    %651 = vmatpush1.msra.mxu0 0.0
    %652 = vmatprep.subr.mxu0 0.0
    %653 = vmatpush1.msra.mxu0 0.0
    %654 = vmatprep.mubr.f32.mxu0 0.0
    %655 = vmatmul.mubr.f32.gmra.mrb[0].mxu0 %v588
    %v656 = vpop.f32.mrb[0].mxu0
    %v657 = vadd.f32 0.0, %v656
    %v658 = vpop.f32.mrb[0].mxu0
    %659 = vdwg.mxu0
    %661 = vrot.lane.b32.xlu0 %v657, 16
    %v662 = vpop.permute.xlu0 %661
    %vm664 = vcmask 195712
    %665 = vst.msk [vmem:[#allocation2] sm:$0xff] %vm664, %v662
    %666 = vrot.lane.b32.xlu0 %v139, 104
    %v667 = vpop.permute.xlu0 %666
    %668 = vrot.lane.b32.xlu0 %v139, 72
    %v669 = vpop.permute.xlu0 %668
    %v670 = vsel %vm155, %v667, 0
    %v672 = vsel %vm155, %v669, 0
    %674 = vmatprep.subr.mxu0 0.0
    %675 = vmatpush1.xpose.msra.mxu0 %v672
    %676 = vmatprep.subr.mxu0 0.0
    %677 = vmatpush1.xpose.msra.mxu0 0.0
    %678 = vmatprep.subr.mxu0 0.0
    %679 = vmatpush1.xpose.msra.mxu0 0.0
    %680 = vmatprep.subr.mxu0 0.0
    %681 = vmatpush1.xpose.msra.mxu0 0.0
    %682 = vmatprep.subr.mxu0 0.0
    %683 = vmatpush1.xpose.msra.mxu0 0.0
    %684 = vmatprep.subr.mxu0 0.0
    %685 = vmatpush1.xpose.msra.mxu0 0.0
    %686 = vmatprep.subr.mxu0 0.0
    %687 = vmatpush1.xpose.msra.mxu0 0.0
    %688 = vmatprep.subr.mxu0 0.0
    %689 = vmatpush1.xpose.msra.mxu0 0.0
    %690 = vmatprep.subr.mxu0 0.0
    %691 = vmatpush1.xpose.msra.mxu0 0.0
    %692 = vmatprep.subr.mxu0 0.0
    %693 = vmatpush1.xpose.msra.mxu0 0.0
    %694 = vmatprep.subr.mxu0 0.0
    %695 = vmatpush1.xpose.msra.mxu0 0.0
    %696 = vmatprep.subr.mxu0 0.0
    %697 = vmatpush1.xpose.msra.mxu0 0.0
    %698 = vmatprep.subr.mxu0 0.0
    %699 = vmatpush1.xpose.msra.mxu0 0.0
    %700 = vmatprep.subr.mxu0 0.0
    %701 = vmatpush1.xpose.msra.mxu0 0.0
    %702 = vmatprep.subr.mxu0 0.0
    %703 = vmatpush1.xpose.msra.mxu0 0.0
    %704 = vmatprep.subr.mxu0 0.0
    %705 = vmatpush1.xpose.msra.mxu0 0.0
    %706 = vmatprep.subr.mxu0 0.0
    %707 = vmatpush1.xpose.msra.mxu0 0.0
    %708 = vmatprep.subr.mxu0 0.0
    %709 = vmatpush1.xpose.msra.mxu0 0.0
    %710 = vmatprep.subr.mxu0 0.0
    %711 = vmatpush1.xpose.msra.mxu0 0.0
    %712 = vmatprep.subr.mxu0 0.0
    %713 = vmatpush1.xpose.msra.mxu0 0.0
    %714 = vmatprep.subr.mxu0 0.0
    %715 = vmatpush1.xpose.msra.mxu0 0.0
    %716 = vmatprep.subr.mxu0 0.0
    %717 = vmatpush1.xpose.msra.mxu0 0.0
    %718 = vmatprep.subr.mxu0 0.0
    %719 = vmatpush1.xpose.msra.mxu0 0.0
    %720 = vmatprep.subr.mxu0 0.0
    %721 = vmatpush1.xpose.msra.mxu0 0.0
    %722 = vmatprep.subr.mxu0 0.0
    %723 = vmatpush1.xpose.msra.mxu0 0.0
    %724 = vmatprep.subr.mxu0 0.0
    %725 = vmatpush1.xpose.msra.mxu0 0.0
    %726 = vmatprep.subr.mxu0 0.0
    %727 = vmatpush1.xpose.msra.mxu0 0.0
    %728 = vmatprep.subr.mxu0 0.0
    %729 = vmatpush1.xpose.msra.mxu0 0.0
    %730 = vmatprep.subr.mxu0 0.0
    %731 = vmatpush1.xpose.msra.mxu0 0.0
    %732 = vmatprep.subr.mxu0 0.0
    %733 = vmatpush1.xpose.msra.mxu0 0.0
    %734 = vmatprep.subr.mxu0 0.0
    %735 = vmatpush1.xpose.msra.mxu0 0.0
    %736 = vmatprep.subr.mxu0 0.0
    %737 = vmatpush1.xpose.msra.mxu0 0.0
    %738 = vmatprep.mubr.f32.mxu0 0.0
    %739 = vmatmul.mubr.f32.gmra.mrb[0].mxu0 %v670
    %v740 = vpop.f32.mrb[0].mxu0
    %v741 = vadd.f32 0.0, %v740
    %v742 = vpop.f32.mrb[0].mxu0
    %743 = vdwg.mxu0
    %v744 = vmul.f32 %v741, 0.17677669
    %v745 = vsel %vm151, %v744, -inf
    %v746 = vsel %vm155, %v745, -inf
    %747 = vmax.xlane.f32.xlu0 %v746
    %v748 = vpop.xlane.xlu0 %747
    %v749 = vsub.f32 %v745, %v748
    %v750 = vmul.f32 %v749, 1.442695
    %v751 = vpow.pop %v750
    %v752 = vsel %vm155, %v751, 0.0
    %753 = vadd.xlane.f32.xlu0 %v752
    %v754 = vpop.xlane.xlu0 %753
    %v755 = vrcp.pop %v754
    %v756 = vmul.f32 %v751, %v755
    %757 = vrot.lane.b32.xlu0 %v139, 40
    %v758 = vpop.permute.xlu0 %757
    %v761 = vsel %vm155, %v756, 0
    %763 = vmatprep.subr.mxu0 0.0
    %764 = vmatpush1.msra.mxu0 %v758
    %765 = vmatprep.subr.mxu0 0.0
    %766 = vmatpush1.msra.mxu0 0.0
    %767 = vmatprep.subr.mxu0 0.0
    %768 = vmatpush1.msra.mxu0 0.0
    %769 = vmatprep.subr.mxu0 0.0
    %770 = vmatpush1.msra.mxu0 0.0
    %771 = vmatprep.subr.mxu0 0.0
    %772 = vmatpush1.msra.mxu0 0.0
    %773 = vmatprep.subr.mxu0 0.0
    %774 = vmatpush1.msra.mxu0 0.0
    %775 = vmatprep.subr.mxu0 0.0
    %776 = vmatpush1.msra.mxu0 0.0
    %777 = vmatprep.subr.mxu0 0.0
    %778 = vmatpush1.msra.mxu0 0.0
    %779 = vmatprep.subr.mxu0 0.0
    %780 = vmatpush1.msra.mxu0 0.0
    %781 = vmatprep.subr.mxu0 0.0
    %782 = vmatpush1.msra.mxu0 0.0
    %783 = vmatprep.subr.mxu0 0.0
    %784 = vmatpush1.msra.mxu0 0.0
    %785 = vmatprep.subr.mxu0 0.0
    %786 = vmatpush1.msra.mxu0 0.0
    %787 = vmatprep.subr.mxu0 0.0
    %788 = vmatpush1.msra.mxu0 0.0
    %789 = vmatprep.subr.mxu0 0.0
    %790 = vmatpush1.msra.mxu0 0.0
    %791 = vmatprep.subr.mxu0 0.0
    %792 = vmatpush1.msra.mxu0 0.0
    %793 = vmatprep.subr.mxu0 0.0
    %794 = vmatpush1.msra.mxu0 0.0
    %795 = vmatprep.subr.mxu0 0.0
    %796 = vmatpush1.msra.mxu0 0.0
    %797 = vmatprep.subr.mxu0 0.0
    %798 = vmatpush1.msra.mxu0 0.0
    %799 = vmatprep.subr.mxu0 0.0
    %800 = vmatpush1.msra.mxu0 0.0
    %801 = vmatprep.subr.mxu0 0.0
    %802 = vmatpush1.msra.mxu0 0.0
    %803 = vmatprep.subr.mxu0 0.0
    %804 = vmatpush1.msra.mxu0 0.0
    %805 = vmatprep.subr.mxu0 0.0
    %806 = vmatpush1.msra.mxu0 0.0
    %807 = vmatprep.subr.mxu0 0.0
    %808 = vmatpush1.msra.mxu0 0.0
    %809 = vmatprep.subr.mxu0 0.0
    %810 = vmatpush1.msra.mxu0 0.0
    %811 = vmatprep.subr.mxu0 0.0
    %812 = vmatpush1.msra.mxu0 0.0
    %813 = vmatprep.subr.mxu0 0.0
    %814 = vmatpush1.msra.mxu0 0.0
    %815 = vmatprep.subr.mxu0 0.0
    %816 = vmatpush1.msra.mxu0 0.0
    %817 = vmatprep.subr.mxu0 0.0
    %818 = vmatpush1.msra.mxu0 0.0
    %819 = vmatprep.subr.mxu0 0.0
    %820 = vmatpush1.msra.mxu0 0.0
    %821 = vmatprep.subr.mxu0 0.0
    %822 = vmatpush1.msra.mxu0 0.0
    %823 = vmatprep.subr.mxu0 0.0
    %824 = vmatpush1.msra.mxu0 0.0
    %825 = vmatprep.subr.mxu0 0.0
    %826 = vmatpush1.msra.mxu0 0.0
    %827 = vmatprep.mubr.f32.mxu0 0.0
    %828 = vmatmul.mubr.f32.gmra.mrb[0].mxu0 %v761
    %v829 = vpop.f32.mrb[0].mxu0
    %v830 = vadd.f32 0.0, %v829
    %v831 = vpop.f32.mrb[0].mxu0
    %832 = vdwg.mxu0
    %834 = vrot.lane.b32.xlu0 %v830, 24
    %v835 = vpop.permute.xlu0 %834
    %vm837 = vcmask 261312
    %838 = vst.msk [vmem:[#allocation2] sm:$0xff] %vm837, %v835
    %840 = vrot.lane.b32.xlu0 %v144, 96
    %v841 = vpop.permute.xlu0 %840
    %v842 = vsel %vm155, %v144, 0
    %v844 = vsel %vm155, %v841, 0
    %846 = vmatprep.subr.mxu0 0.0
    %847 = vmatpush1.xpose.msra.mxu0 %v844
    %848 = vmatprep.subr.mxu0 0.0
    %849 = vmatpush1.xpose.msra.mxu0 0.0
    %850 = vmatprep.subr.mxu0 0.0
    %851 = vmatpush1.xpose.msra.mxu0 0.0
    %852 = vmatprep.subr.mxu0 0.0
    %853 = vmatpush1.xpose.msra.mxu0 0.0
    %854 = vmatprep.subr.mxu0 0.0
    %855 = vmatpush1.xpose.msra.mxu0 0.0
    %856 = vmatprep.subr.mxu0 0.0
    %857 = vmatpush1.xpose.msra.mxu0 0.0
    %858 = vmatprep.subr.mxu0 0.0
    %859 = vmatpush1.xpose.msra.mxu0 0.0
    %860 = vmatprep.subr.mxu0 0.0
    %861 = vmatpush1.xpose.msra.mxu0 0.0
    %862 = vmatprep.subr.mxu0 0.0
    %863 = vmatpush1.xpose.msra.mxu0 0.0
    %864 = vmatprep.subr.mxu0 0.0
    %865 = vmatpush1.xpose.msra.mxu0 0.0
    %866 = vmatprep.subr.mxu0 0.0
    %867 = vmatpush1.xpose.msra.mxu0 0.0
    %868 = vmatprep.subr.mxu0 0.0
    %869 = vmatpush1.xpose.msra.mxu0 0.0
    %870 = vmatprep.subr.mxu0 0.0
    %871 = vmatpush1.xpose.msra.mxu0 0.0
    %872 = vmatprep.subr.mxu0 0.0
    %873 = vmatpush1.xpose.msra.mxu0 0.0
    %874 = vmatprep.subr.mxu0 0.0
    %875 = vmatpush1.xpose.msra.mxu0 0.0
    %876 = vmatprep.subr.mxu0 0.0
    %877 = vmatpush1.xpose.msra.mxu0 0.0
    %878 = vmatprep.subr.mxu0 0.0
    %879 = vmatpush1.xpose.msra.mxu0 0.0
    %880 = vmatprep.subr.mxu0 0.0
    %881 = vmatpush1.xpose.msra.mxu0 0.0
    %882 = vmatprep.subr.mxu0 0.0
    %883 = vmatpush1.xpose.msra.mxu0 0.0
    %884 = vmatprep.subr.mxu0 0.0
    %885 = vmatpush1.xpose.msra.mxu0 0.0
    %886 = vmatprep.subr.mxu0 0.0
    %887 = vmatpush1.xpose.msra.mxu0 0.0
    %888 = vmatprep.subr.mxu0 0.0
    %889 = vmatpush1.xpose.msra.mxu0 0.0
    %890 = vmatprep.subr.mxu0 0.0
    %891 = vmatpush1.xpose.msra.mxu0 0.0
    %892 = vmatprep.subr.mxu0 0.0
    %893 = vmatpush1.xpose.msra.mxu0 0.0
    %894 = vmatprep.subr.mxu0 0.0
    %895 = vmatpush1.xpose.msra.mxu0 0.0
    %896 = vmatprep.subr.mxu0 0.0
    %897 = vmatpush1.xpose.msra.mxu0 0.0
    %898 = vmatprep.subr.mxu0 0.0
    %899 = vmatpush1.xpose.msra.mxu0 0.0
    %900 = vmatprep.subr.mxu0 0.0
    %901 = vmatpush1.xpose.msra.mxu0 0.0
    %902 = vmatprep.subr.mxu0 0.0
    %903 = vmatpush1.xpose.msra.mxu0 0.0
    %904 = vmatprep.subr.mxu0 0.0
    %905 = vmatpush1.xpose.msra.mxu0 0.0
    %906 = vmatprep.subr.mxu0 0.0
    %907 = vmatpush1.xpose.msra.mxu0 0.0
    %908 = vmatprep.subr.mxu0 0.0
    %909 = vmatpush1.xpose.msra.mxu0 0.0
    %910 = vmatprep.mubr.f32.mxu0 0.0
    %911 = vmatmul.mubr.f32.gmra.mrb[0].mxu0 %v842
    %v912 = vpop.f32.mrb[0].mxu0
    %v913 = vadd.f32 0.0, %v912
    %v914 = vpop.f32.mrb[0].mxu0
    %915 = vdwg.mxu0
    %v916 = vmul.f32 %v913, 0.17677669
    %v917 = vsel %vm151, %v916, -inf
    %v918 = vsel %vm155, %v917, -inf
    %919 = vmax.xlane.f32.xlu0 %v918
    %v920 = vpop.xlane.xlu0 %919
    %v921 = vsub.f32 %v917, %v920
    %v922 = vmul.f32 %v921, 1.442695
    %v923 = vpow.pop %v922
    %v924 = vsel %vm155, %v923, 0.0
    %925 = vadd.xlane.f32.xlu0 %v924
    %v926 = vpop.xlane.xlu0 %925
    %v927 = vrcp.pop %v926
    %v928 = vmul.f32 %v923, %v927
    %929 = vrot.lane.b32.xlu0 %v144, 64
    %v930 = vpop.permute.xlu0 %929
    %v933 = vsel %vm155, %v928, 0
    %935 = vmatprep.subr.mxu0 0.0
    %936 = vmatpush1.msra.mxu0 %v930
    %937 = vmatprep.subr.mxu0 0.0
    %938 = vmatpush1.msra.mxu0 0.0
    %939 = vmatprep.subr.mxu0 0.0
    %940 = vmatpush1.msra.mxu0 0.0
    %941 = vmatprep.subr.mxu0 0.0
    %942 = vmatpush1.msra.mxu0 0.0
    %943 = vmatprep.subr.mxu0 0.0
    %944 = vmatpush1.msra.mxu0 0.0
    %945 = vmatprep.subr.mxu0 0.0
    %946 = vmatpush1.msra.mxu0 0.0
    %947 = vmatprep.subr.mxu0 0.0
    %948 = vmatpush1.msra.mxu0 0.0
    %949 = vmatprep.subr.mxu0 0.0
    %950 = vmatpush1.msra.mxu0 0.0
    %951 = vmatprep.subr.mxu0 0.0
    %952 = vmatpush1.msra.mxu0 0.0
    %953 = vmatprep.subr.mxu0 0.0
    %954 = vmatpush1.msra.mxu0 0.0
    %955 = vmatprep.subr.mxu0 0.0
    %956 = vmatpush1.msra.mxu0 0.0
    %957 = vmatprep.subr.mxu0 0.0
    %958 = vmatpush1.msra.mxu0 0.0
    %959 = vmatprep.subr.mxu0 0.0
    %960 = vmatpush1.msra.mxu0 0.0
    %961 = vmatprep.subr.mxu0 0.0
    %962 = vmatpush1.msra.mxu0 0.0
    %963 = vmatprep.subr.mxu0 0.0
    %964 = vmatpush1.msra.mxu0 0.0
    %965 = vmatprep.subr.mxu0 0.0
    %966 = vmatpush1.msra.mxu0 0.0
    %967 = vmatprep.subr.mxu0 0.0
    %968 = vmatpush1.msra.mxu0 0.0
    %969 = vmatprep.subr.mxu0 0.0
    %970 = vmatpush1.msra.mxu0 0.0
    %971 = vmatprep.subr.mxu0 0.0
    %972 = vmatpush1.msra.mxu0 0.0
    %973 = vmatprep.subr.mxu0 0.0
    %974 = vmatpush1.msra.mxu0 0.0
    %975 = vmatprep.subr.mxu0 0.0
    %976 = vmatpush1.msra.mxu0 0.0
    %977 = vmatprep.subr.mxu0 0.0
    %978 = vmatpush1.msra.mxu0 0.0
    %979 = vmatprep.subr.mxu0 0.0
    %980 = vmatpush1.msra.mxu0 0.0
    %981 = vmatprep.subr.mxu0 0.0
    %982 = vmatpush1.msra.mxu0 0.0
    %983 = vmatprep.subr.mxu0 0.0
    %984 = vmatpush1.msra.mxu0 0.0
    %985 = vmatprep.subr.mxu0 0.0
    %986 = vmatpush1.msra.mxu0 0.0
    %987 = vmatprep.subr.mxu0 0.0
    %988 = vmatpush1.msra.mxu0 0.0
    %989 = vmatprep.subr.mxu0 0.0
    %990 = vmatpush1.msra.mxu0 0.0
    %991 = vmatprep.subr.mxu0 0.0
    %992 = vmatpush1.msra.mxu0 0.0
    %993 = vmatprep.subr.mxu0 0.0
    %994 = vmatpush1.msra.mxu0 0.0
    %995 = vmatprep.subr.mxu0 0.0
    %996 = vmatpush1.msra.mxu0 0.0
    %997 = vmatprep.subr.mxu0 0.0
    %998 = vmatpush1.msra.mxu0 0.0
    %999 = vmatprep.mubr.f32.mxu0 0.0
    %1000 = vmatmul.mubr.f32.gmra.mrb[0].mxu0 %v933
    %v1001 = vpop.f32.mrb[0].mxu0
    %v1002 = vadd.f32 0.0, %v1001
    %v1003 = vpop.f32.mrb[0].mxu0
    %1004 = vdwg.mxu0
    %1005 = vst.msk [vmem:[#allocation2 + $0x8] sm:$0xff] %vm155, %v1002
    %1006 = vrot.lane.b32.xlu0 %v144, 120
    %v1007 = vpop.permute.xlu0 %1006
    %1008 = vrot.lane.b32.xlu0 %v144, 88
    %v1009 = vpop.permute.xlu0 %1008
    %v1010 = vsel %vm155, %v1007, 0
    %v1012 = vsel %vm155, %v1009, 0
    %1014 = vmatprep.subr.mxu0 0.0
    %1015 = vmatpush1.xpose.msra.mxu0 %v1012
    %1016 = vmatprep.subr.mxu0 0.0
    %1017 = vmatpush1.xpose.msra.mxu0 0.0
    %1018 = vmatprep.subr.mxu0 0.0
    %1019 = vmatpush1.xpose.msra.mxu0 0.0
    %1020 = vmatprep.subr.mxu0 0.0
    %1021 = vmatpush1.xpose.msra.mxu0 0.0
    %1022 = vmatprep.subr.mxu0 0.0
    %1023 = vmatpush1.xpose.msra.mxu0 0.0
    %1024 = vmatprep.subr.mxu0 0.0
    %1025 = vmatpush1.xpose.msra.mxu0 0.0
    %1026 = vmatprep.subr.mxu0 0.0
    %1027 = vmatpush1.xpose.msra.mxu0 0.0
    %1028 = vmatprep.subr.mxu0 0.0
    %1029 = vmatpush1.xpose.msra.mxu0 0.0
    %1030 = vmatprep.subr.mxu0 0.0
    %1031 = vmatpush1.xpose.msra.mxu0 0.0
    %1032 = vmatprep.subr.mxu0 0.0
    %1033 = vmatpush1.xpose.msra.mxu0 0.0
    %1034 = vmatprep.subr.mxu0 0.0
    %1035 = vmatpush1.xpose.msra.mxu0 0.0
    %1036 = vmatprep.subr.mxu0 0.0
    %1037 = vmatpush1.xpose.msra.mxu0 0.0
    %1038 = vmatprep.subr.mxu0 0.0
    %1039 = vmatpush1.xpose.msra.mxu0 0.0
    %1040 = vmatprep.subr.mxu0 0.0
    %1041 = vmatpush1.xpose.msra.mxu0 0.0
    %1042 = vmatprep.subr.mxu0 0.0
    %1043 = vmatpush1.xpose.msra.mxu0 0.0
    %1044 = vmatprep.subr.mxu0 0.0
    %1045 = vmatpush1.xpose.msra.mxu0 0.0
    %1046 = vmatprep.subr.mxu0 0.0
    %1047 = vmatpush1.xpose.msra.mxu0 0.0
    %1048 = vmatprep.subr.mxu0 0.0
    %1049 = vmatpush1.xpose.msra.mxu0 0.0
    %1050 = vmatprep.subr.mxu0 0.0
    %1051 = vmatpush1.xpose.msra.mxu0 0.0
    %1052 = vmatprep.subr.mxu0 0.0
    %1053 = vmatpush1.xpose.msra.mxu0 0.0
    %1054 = vmatprep.subr.mxu0 0.0
    %1055 = vmatpush1.xpose.msra.mxu0 0.0
    %1056 = vmatprep.subr.mxu0 0.0
    %1057 = vmatpush1.xpose.msra.mxu0 0.0
    %1058 = vmatprep.subr.mxu0 0.0
    %1059 = vmatpush1.xpose.msra.mxu0 0.0
    %1060 = vmatprep.subr.mxu0 0.0
    %1061 = vmatpush1.xpose.msra.mxu0 0.0
    %1062 = vmatprep.subr.mxu0 0.0
    %1063 = vmatpush1.xpose.msra.mxu0 0.0
    %1064 = vmatprep.subr.mxu0 0.0
    %1065 = vmatpush1.xpose.msra.mxu0 0.0
    %1066 = vmatprep.subr.mxu0 0.0
    %1067 = vmatpush1.xpose.msra.mxu0 0.0
    %1068 = vmatprep.subr.mxu0 0.0
    %1069 = vmatpush1.xpose.msra.mxu0 0.0
    %1070 = vmatprep.subr.mxu0 0.0
    %1071 = vmatpush1.xpose.msra.mxu0 0.0
    %1072 = vmatprep.subr.mxu0 0.0
    %1073 = vmatpush1.xpose.msra.mxu0 0.0
    %1074 = vmatprep.subr.mxu0 0.0
    %1075 = vmatpush1.xpose.msra.mxu0 0.0
    %1076 = vmatprep.subr.mxu0 0.0
    %1077 = vmatpush1.xpose.msra.mxu0 0.0
    %1078 = vmatprep.mubr.f32.mxu0 0.0
    %1079 = vmatmul.mubr.f32.gmra.mrb[0].mxu0 %v1010
    %v1080 = vpop.f32.mrb[0].mxu0
    %v1081 = vadd.f32 0.0, %v1080
    %v1082 = vpop.f32.mrb[0].mxu0
    %1083 = vdwg.mxu0
    %v1084 = vmul.f32 %v1081, 0.17677669
    %v1085 = vsel %vm151, %v1084, -inf
    %v1086 = vsel %vm155, %v1085, -inf
    %1087 = vmax.xlane.f32.xlu0 %v1086
    %v1088 = vpop.xlane.xlu0 %1087
    %v1089 = vsub.f32 %v1085, %v1088
    %v1090 = vmul.f32 %v1089, 1.442695
    %v1091 = vpow.pop %v1090
    %v1092 = vsel %vm155, %v1091, 0.0
    %1093 = vadd.xlane.f32.xlu0 %v1092
    %v1094 = vpop.xlane.xlu0 %1093
    %v1095 = vrcp.pop %v1094
    %v1096 = vmul.f32 %v1091, %v1095
    %1097 = vrot.lane.b32.xlu0 %v144, 56
    %v1098 = vpop.permute.xlu0 %1097
    %v1101 = vsel %vm155, %v1096, 0
    %1103 = vmatprep.subr.mxu0 0.0
    %1104 = vmatpush1.msra.mxu0 %v1098
    %1105 = vmatprep.subr.mxu0 0.0
    %1106 = vmatpush1.msra.mxu0 0.0
    %1107 = vmatprep.subr.mxu0 0.0
    %1108 = vmatpush1.msra.mxu0 0.0
    %1109 = vmatprep.subr.mxu0 0.0
    %1110 = vmatpush1.msra.mxu0 0.0
    %1111 = vmatprep.subr.mxu0 0.0
    %1112 = vmatpush1.msra.mxu0 0.0
    %1113 = vmatprep.subr.mxu0 0.0
    %1114 = vmatpush1.msra.mxu0 0.0
    %1115 = vmatprep.subr.mxu0 0.0
    %1116 = vmatpush1.msra.mxu0 0.0
    %1117 = vmatprep.subr.mxu0 0.0
    %1118 = vmatpush1.msra.mxu0 0.0
    %1119 = vmatprep.subr.mxu0 0.0
    %1120 = vmatpush1.msra.mxu0 0.0
    %1121 = vmatprep.subr.mxu0 0.0
    %1122 = vmatpush1.msra.mxu0 0.0
    %1123 = vmatprep.subr.mxu0 0.0
    %1124 = vmatpush1.msra.mxu0 0.0
    %1125 = vmatprep.subr.mxu0 0.0
    %1126 = vmatpush1.msra.mxu0 0.0
    %1127 = vmatprep.subr.mxu0 0.0
    %1128 = vmatpush1.msra.mxu0 0.0
    %1129 = vmatprep.subr.mxu0 0.0
    %1130 = vmatpush1.msra.mxu0 0.0
    %1131 = vmatprep.subr.mxu0 0.0
    %1132 = vmatpush1.msra.mxu0 0.0
    %1133 = vmatprep.subr.mxu0 0.0
    %1134 = vmatpush1.msra.mxu0 0.0
    %1135 = vmatprep.subr.mxu0 0.0
    %1136 = vmatpush1.msra.mxu0 0.0
    %1137 = vmatprep.subr.mxu0 0.0
    %1138 = vmatpush1.msra.mxu0 0.0
    %1139 = vmatprep.subr.mxu0 0.0
    %1140 = vmatpush1.msra.mxu0 0.0
    %1141 = vmatprep.subr.mxu0 0.0
    %1142 = vmatpush1.msra.mxu0 0.0
    %1143 = vmatprep.subr.mxu0 0.0
    %1144 = vmatpush1.msra.mxu0 0.0
    %1145 = vmatprep.subr.mxu0 0.0
    %1146 = vmatpush1.msra.mxu0 0.0
    %1147 = vmatprep.subr.mxu0 0.0
    %1148 = vmatpush1.msra.mxu0 0.0
    %1149 = vmatprep.subr.mxu0 0.0
    %1150 = vmatpush1.msra.mxu0 0.0
    %1151 = vmatprep.subr.mxu0 0.0
    %1152 = vmatpush1.msra.mxu0 0.0
    %1153 = vmatprep.subr.mxu0 0.0
    %1154 = vmatpush1.msra.mxu0 0.0
    %1155 = vmatprep.subr.mxu0 0.0
    %1156 = vmatpush1.msra.mxu0 0.0
    %1157 = vmatprep.subr.mxu0 0.0
    %1158 = vmatpush1.msra.mxu0 0.0
    %1159 = vmatprep.subr.mxu0 0.0
    %1160 = vmatpush1.msra.mxu0 0.0
    %1161 = vmatprep.subr.mxu0 0.0
    %1162 = vmatpush1.msra.mxu0 0.0
    %1163 = vmatprep.subr.mxu0 0.0
    %1164 = vmatpush1.msra.mxu0 0.0
    %1165 = vmatprep.subr.mxu0 0.0
    %1166 = vmatpush1.msra.mxu0 0.0
    %1167 = vmatprep.mubr.f32.mxu0 0.0
    %1168 = vmatmul.mubr.f32.gmra.mrb[0].mxu0 %v1101
    %v1169 = vpop.f32.mrb[0].mxu0
    %v1170 = vadd.f32 0.0, %v1169
    %v1171 = vpop.f32.mrb[0].mxu0
    %1172 = vdwg.mxu0
    %1174 = vrot.lane.b32.xlu0 %v1170, 8
    %v1175 = vpop.permute.xlu0 %1174
    %1177 = vst.msk [vmem:[#allocation2 + $0x8] sm:$0xff] %vm491, %v1175
    %1178 = vrot.lane.b32.xlu0 %v144, 112
    %v1179 = vpop.permute.xlu0 %1178
    %1180 = vrot.lane.b32.xlu0 %v144, 80
    %v1181 = vpop.permute.xlu0 %1180
    %v1182 = vsel %vm155, %v1179, 0
    %v1184 = vsel %vm155, %v1181, 0
    %1186 = vmatprep.subr.mxu0 0.0
    %1187 = vmatpush1.xpose.msra.mxu0 %v1184
    %1188 = vmatprep.subr.mxu0 0.0
    %1189 = vmatpush1.xpose.msra.mxu0 0.0
    %1190 = vmatprep.subr.mxu0 0.0
    %1191 = vmatpush1.xpose.msra.mxu0 0.0
    %1192 = vmatprep.subr.mxu0 0.0
    %1193 = vmatpush1.xpose.msra.mxu0 0.0
    %1194 = vmatprep.subr.mxu0 0.0
    %1195 = vmatpush1.xpose.msra.mxu0 0.0
    %1196 = vmatprep.subr.mxu0 0.0
    %1197 = vmatpush1.xpose.msra.mxu0 0.0
    %1198 = vmatprep.subr.mxu0 0.0
    %1199 = vmatpush1.xpose.msra.mxu0 0.0
    %1200 = vmatprep.subr.mxu0 0.0
    %1201 = vmatpush1.xpose.msra.mxu0 0.0
    %1202 = vmatprep.subr.mxu0 0.0
    %1203 = vmatpush1.xpose.msra.mxu0 0.0
    %1204 = vmatprep.subr.mxu0 0.0
    %1205 = vmatpush1.xpose.msra.mxu0 0.0
    %1206 = vmatprep.subr.mxu0 0.0
    %1207 = vmatpush1.xpose.msra.mxu0 0.0
    %1208 = vmatprep.subr.mxu0 0.0
    %1209 = vmatpush1.xpose.msra.mxu0 0.0
    %1210 = vmatprep.subr.mxu0 0.0
    %1211 = vmatpush1.xpose.msra.mxu0 0.0
    %1212 = vmatprep.subr.mxu0 0.0
    %1213 = vmatpush1.xpose.msra.mxu0 0.0
    %1214 = vmatprep.subr.mxu0 0.0
    %1215 = vmatpush1.xpose.msra.mxu0 0.0
    %1216 = vmatprep.subr.mxu0 0.0
    %1217 = vmatpush1.xpose.msra.mxu0 0.0
    %1218 = vmatprep.subr.mxu0 0.0
    %1219 = vmatpush1.xpose.msra.mxu0 0.0
    %1220 = vmatprep.subr.mxu0 0.0
    %1221 = vmatpush1.xpose.msra.mxu0 0.0
    %1222 = vmatprep.subr.mxu0 0.0
    %1223 = vmatpush1.xpose.msra.mxu0 0.0
    %1224 = vmatprep.subr.mxu0 0.0
    %1225 = vmatpush1.xpose.msra.mxu0 0.0
    %1226 = vmatprep.subr.mxu0 0.0
    %1227 = vmatpush1.xpose.msra.mxu0 0.0
    %1228 = vmatprep.subr.mxu0 0.0
    %1229 = vmatpush1.xpose.msra.mxu0 0.0
    %1230 = vmatprep.subr.mxu0 0.0
    %1231 = vmatpush1.xpose.msra.mxu0 0.0
    %1232 = vmatprep.subr.mxu0 0.0
    %1233 = vmatpush1.xpose.msra.mxu0 0.0
    %1234 = vmatprep.subr.mxu0 0.0
    %1235 = vmatpush1.xpose.msra.mxu0 0.0
    %1236 = vmatprep.subr.mxu0 0.0
    %1237 = vmatpush1.xpose.msra.mxu0 0.0
    %1238 = vmatprep.subr.mxu0 0.0
    %1239 = vmatpush1.xpose.msra.mxu0 0.0
    %1240 = vmatprep.subr.mxu0 0.0
    %1241 = vmatpush1.xpose.msra.mxu0 0.0
    %1242 = vmatprep.subr.mxu0 0.0
    %1243 = vmatpush1.xpose.msra.mxu0 0.0
    %1244 = vmatprep.subr.mxu0 0.0
    %1245 = vmatpush1.xpose.msra.mxu0 0.0
    %1246 = vmatprep.subr.mxu0 0.0
    %1247 = vmatpush1.xpose.msra.mxu0 0.0
    %1248 = vmatprep.subr.mxu0 0.0
    %1249 = vmatpush1.xpose.msra.mxu0 0.0
    %1250 = vmatprep.mubr.f32.mxu0 0.0
    %1251 = vmatmul.mubr.f32.gmra.mrb[0].mxu0 %v1182
    %v1252 = vpop.f32.mrb[0].mxu0
    %v1253 = vadd.f32 0.0, %v1252
    %v1254 = vpop.f32.mrb[0].mxu0
    %1255 = vdwg.mxu0
    %v1256 = vmul.f32 %v1253, 0.17677669
    %v1257 = vsel %vm151, %v1256, -inf
    %v1258 = vsel %vm155, %v1257, -inf
    %1259 = vmax.xlane.f32.xlu0 %v1258
    %v1260 = vpop.xlane.xlu0 %1259
    %v1261 = vsub.f32 %v1257, %v1260
    %v1262 = vmul.f32 %v1261, 1.442695
    %v1263 = vpow.pop %v1262
    %v1264 = vsel %vm155, %v1263, 0.0
    %1265 = vadd.xlane.f32.xlu0 %v1264
    %v1266 = vpop.xlane.xlu0 %1265
    %v1267 = vrcp.pop %v1266
    %v1268 = vmul.f32 %v1263, %v1267
    %1269 = vrot.lane.b32.xlu0 %v144, 48
    %v1270 = vpop.permute.xlu0 %1269
    %v1273 = vsel %vm155, %v1268, 0
    %1275 = vmatprep.subr.mxu0 0.0
    %1276 = vmatpush1.msra.mxu0 %v1270
    %1277 = vmatprep.subr.mxu0 0.0
    %1278 = vmatpush1.msra.mxu0 0.0
    %1279 = vmatprep.subr.mxu0 0.0
    %1280 = vmatpush1.msra.mxu0 0.0
    %1281 = vmatprep.subr.mxu0 0.0
    %1282 = vmatpush1.msra.mxu0 0.0
    %1283 = vmatprep.subr.mxu0 0.0
    %1284 = vmatpush1.msra.mxu0 0.0
    %1285 = vmatprep.subr.mxu0 0.0
    %1286 = vmatpush1.msra.mxu0 0.0
    %1287 = vmatprep.subr.mxu0 0.0
    %1288 = vmatpush1.msra.mxu0 0.0
    %1289 = vmatprep.subr.mxu0 0.0
    %1290 = vmatpush1.msra.mxu0 0.0
    %1291 = vmatprep.subr.mxu0 0.0
    %1292 = vmatpush1.msra.mxu0 0.0
    %1293 = vmatprep.subr.mxu0 0.0
    %1294 = vmatpush1.msra.mxu0 0.0
    %1295 = vmatprep.subr.mxu0 0.0
    %1296 = vmatpush1.msra.mxu0 0.0
    %1297 = vmatprep.subr.mxu0 0.0
    %1298 = vmatpush1.msra.mxu0 0.0
    %1299 = vmatprep.subr.mxu0 0.0
    %1300 = vmatpush1.msra.mxu0 0.0
    %1301 = vmatprep.subr.mxu0 0.0
    %1302 = vmatpush1.msra.mxu0 0.0
    %1303 = vmatprep.subr.mxu0 0.0
    %1304 = vmatpush1.msra.mxu0 0.0
    %1305 = vmatprep.subr.mxu0 0.0
    %1306 = vmatpush1.msra.mxu0 0.0
    %1307 = vmatprep.subr.mxu0 0.0
    %1308 = vmatpush1.msra.mxu0 0.0
    %1309 = vmatprep.subr.mxu0 0.0
    %1310 = vmatpush1.msra.mxu0 0.0
    %1311 = vmatprep.subr.mxu0 0.0
    %1312 = vmatpush1.msra.mxu0 0.0
    %1313 = vmatprep.subr.mxu0 0.0
    %1314 = vmatpush1.msra.mxu0 0.0
    %1315 = vmatprep.subr.mxu0 0.0
    %1316 = vmatpush1.msra.mxu0 0.0
    %1317 = vmatprep.subr.mxu0 0.0
    %1318 = vmatpush1.msra.mxu0 0.0
    %1319 = vmatprep.subr.mxu0 0.0
    %1320 = vmatpush1.msra.mxu0 0.0
    %1321 = vmatprep.subr.mxu0 0.0
    %1322 = vmatpush1.msra.mxu0 0.0
    %1323 = vmatprep.subr.mxu0 0.0
    %1324 = vmatpush1.msra.mxu0 0.0
    %1325 = vmatprep.subr.mxu0 0.0
    %1326 = vmatpush1.msra.mxu0 0.0
    %1327 = vmatprep.subr.mxu0 0.0
    %1328 = vmatpush1.msra.mxu0 0.0
    %1329 = vmatprep.subr.mxu0 0.0
    %1330 = vmatpush1.msra.mxu0 0.0
    %1331 = vmatprep.subr.mxu0 0.0
    %1332 = vmatpush1.msra.mxu0 0.0
    %1333 = vmatprep.subr.mxu0 0.0
    %1334 = vmatpush1.msra.mxu0 0.0
    %1335 = vmatprep.subr.mxu0 0.0
    %1336 = vmatpush1.msra.mxu0 0.0
    %1337 = vmatprep.subr.mxu0 0.0
    %1338 = vmatpush1.msra.mxu0 0.0
    %1339 = vmatprep.mubr.f32.mxu0 0.0
    %1340 = vmatmul.mubr.f32.gmra.mrb[0].mxu0 %v1273
    %v1341 = vpop.f32.mrb[0].mxu0
    %v1342 = vadd.f32 0.0, %v1341
    %v1343 = vpop.f32.mrb[0].mxu0
    %1344 = vdwg.mxu0
    %1346 = vrot.lane.b32.xlu0 %v1342, 16
    %v1347 = vpop.permute.xlu0 %1346
    %1349 = vst.msk [vmem:[#allocation2 + $0x8] sm:$0xff] %vm664, %v1347
    %1350 = vrot.lane.b32.xlu0 %v144, 104
    %v1351 = vpop.permute.xlu0 %1350
    %1352 = vrot.lane.b32.xlu0 %v144, 72
    %v1353 = vpop.permute.xlu0 %1352
    %v1354 = vsel %vm155, %v1351, 0
    %v1356 = vsel %vm155, %v1353, 0
    %1358 = vmatprep.subr.mxu0 0.0
    %1359 = vmatpush1.xpose.msra.mxu0 %v1356
    %1360 = vmatprep.subr.mxu0 0.0
    %1361 = vmatpush1.xpose.msra.mxu0 0.0
    %1362 = vmatprep.subr.mxu0 0.0
    %1363 = vmatpush1.xpose.msra.mxu0 0.0
    %1364 = vmatprep.subr.mxu0 0.0
    %1365 = vmatpush1.xpose.msra.mxu0 0.0
    %1366 = vmatprep.subr.mxu0 0.0
    %1367 = vmatpush1.xpose.msra.mxu0 0.0
    %1368 = vmatprep.subr.mxu0 0.0
    %1369 = vmatpush1.xpose.msra.mxu0 0.0
    %1370 = vmatprep.subr.mxu0 0.0
    %1371 = vmatpush1.xpose.msra.mxu0 0.0
    %1372 = vmatprep.subr.mxu0 0.0
    %1373 = vmatpush1.xpose.msra.mxu0 0.0
    %1374 = vmatprep.subr.mxu0 0.0
    %1375 = vmatpush1.xpose.msra.mxu0 0.0
    %1376 = vmatprep.subr.mxu0 0.0
    %1377 = vmatpush1.xpose.msra.mxu0 0.0
    %1378 = vmatprep.subr.mxu0 0.0
    %1379 = vmatpush1.xpose.msra.mxu0 0.0
    %1380 = vmatprep.subr.mxu0 0.0
    %1381 = vmatpush1.xpose.msra.mxu0 0.0
    %1382 = vmatprep.subr.mxu0 0.0
    %1383 = vmatpush1.xpose.msra.mxu0 0.0
    %1384 = vmatprep.subr.mxu0 0.0
    %1385 = vmatpush1.xpose.msra.mxu0 0.0
    %1386 = vmatprep.subr.mxu0 0.0
    %1387 = vmatpush1.xpose.msra.mxu0 0.0
    %1388 = vmatprep.subr.mxu0 0.0
    %1389 = vmatpush1.xpose.msra.mxu0 0.0
    %1390 = vmatprep.subr.mxu0 0.0
    %1391 = vmatpush1.xpose.msra.mxu0 0.0
    %1392 = vmatprep.subr.mxu0 0.0
    %1393 = vmatpush1.xpose.msra.mxu0 0.0
    %1394 = vmatprep.subr.mxu0 0.0
    %1395 = vmatpush1.xpose.msra.mxu0 0.0
    %1396 = vmatprep.subr.mxu0 0.0
    %1397 = vmatpush1.xpose.msra.mxu0 0.0
    %1398 = vmatprep.subr.mxu0 0.0
    %1399 = vmatpush1.xpose.msra.mxu0 0.0
    %1400 = vmatprep.subr.mxu0 0.0
    %1401 = vmatpush1.xpose.msra.mxu0 0.0
    %1402 = vmatprep.subr.mxu0 0.0
    %1403 = vmatpush1.xpose.msra.mxu0 0.0
    %1404 = vmatprep.subr.mxu0 0.0
    %1405 = vmatpush1.xpose.msra.mxu0 0.0
    %1406 = vmatprep.subr.mxu0 0.0
    %1407 = vmatpush1.xpose.msra.mxu0 0.0
    %1408 = vmatprep.subr.mxu0 0.0
    %1409 = vmatpush1.xpose.msra.mxu0 0.0
    %1410 = vmatprep.subr.mxu0 0.0
    %1411 = vmatpush1.xpose.msra.mxu0 0.0
    %1412 = vmatprep.subr.mxu0 0.0
    %1413 = vmatpush1.xpose.msra.mxu0 0.0
    %1414 = vmatprep.subr.mxu0 0.0
    %1415 = vmatpush1.xpose.msra.mxu0 0.0
    %1416 = vmatprep.subr.mxu0 0.0
    %1417 = vmatpush1.xpose.msra.mxu0 0.0
    %1418 = vmatprep.subr.mxu0 0.0
    %1419 = vmatpush1.xpose.msra.mxu0 0.0
    %1420 = vmatprep.subr.mxu0 0.0
    %1421 = vmatpush1.xpose.msra.mxu0 0.0
    %1422 = vmatprep.mubr.f32.mxu0 0.0
    %1423 = vmatmul.mubr.f32.gmra.mrb[0].mxu0 %v1354
    %v1424 = vpop.f32.mrb[0].mxu0
    %v1425 = vadd.f32 0.0, %v1424
    %v1426 = vpop.f32.mrb[0].mxu0
    %1427 = vdwg.mxu0
    %v1428 = vmul.f32 %v1425, 0.17677669
    %v1429 = vsel %vm151, %v1428, -inf
    %v1430 = vsel %vm155, %v1429, -inf
    %1431 = vmax.xlane.f32.xlu0 %v1430
    %v1432 = vpop.xlane.xlu0 %1431
    %v1433 = vsub.f32 %v1429, %v1432
    %v1434 = vmul.f32 %v1433, 1.442695
    %v1435 = vpow.pop %v1434
    %v1436 = vsel %vm155, %v1435, 0.0
    %1437 = vadd.xlane.f32.xlu0 %v1436
    %v1438 = vpop.xlane.xlu0 %1437
    %v1439 = vrcp.pop %v1438
    %v1440 = vmul.f32 %v1435, %v1439
    %1441 = vrot.lane.b32.xlu0 %v144, 40
    %v1442 = vpop.permute.xlu0 %1441
    %v1445 = vsel %vm155, %v1440, 0
    %1447 = vmatprep.subr.mxu0 0.0
    %1448 = vmatpush1.msra.mxu0 %v1442
    %1449 = vmatprep.subr.mxu0 0.0
    %1450 = vmatpush1.msra.mxu0 0.0
    %1451 = vmatprep.subr.mxu0 0.0
    %1452 = vmatpush1.msra.mxu0 0.0
    %1453 = vmatprep.subr.mxu0 0.0
    %1454 = vmatpush1.msra.mxu0 0.0
    %1455 = vmatprep.subr.mxu0 0.0
    %1456 = vmatpush1.msra.mxu0 0.0
    %1457 = vmatprep.subr.mxu0 0.0
    %1458 = vmatpush1.msra.mxu0 0.0
    %1459 = vmatprep.subr.mxu0 0.0
    %1460 = vmatpush1.msra.mxu0 0.0
    %1461 = vmatprep.subr.mxu0 0.0
    %1462 = vmatpush1.msra.mxu0 0.0
    %1463 = vmatprep.subr.mxu0 0.0
    %1464 = vmatpush1.msra.mxu0 0.0
    %1465 = vmatprep.subr.mxu0 0.0
    %1466 = vmatpush1.msra.mxu0 0.0
    %1467 = vmatprep.subr.mxu0 0.0
    %1468 = vmatpush1.msra.mxu0 0.0
    %1469 = vmatprep.subr.mxu0 0.0
    %1470 = vmatpush1.msra.mxu0 0.0
    %1471 = vmatprep.subr.mxu0 0.0
    %1472 = vmatpush1.msra.mxu0 0.0
    %1473 = vmatprep.subr.mxu0 0.0
    %1474 = vmatpush1.msra.mxu0 0.0
    %1475 = vmatprep.subr.mxu0 0.0
    %1476 = vmatpush1.msra.mxu0 0.0
    %1477 = vmatprep.subr.mxu0 0.0
    %1478 = vmatpush1.msra.mxu0 0.0
    %1479 = vmatprep.subr.mxu0 0.0
    %1480 = vmatpush1.msra.mxu0 0.0
    %1481 = vmatprep.subr.mxu0 0.0
    %1482 = vmatpush1.msra.mxu0 0.0
    %1483 = vmatprep.subr.mxu0 0.0
    %1484 = vmatpush1.msra.mxu0 0.0
    %1485 = vmatprep.subr.mxu0 0.0
    %1486 = vmatpush1.msra.mxu0 0.0
    %1487 = vmatprep.subr.mxu0 0.0
    %1488 = vmatpush1.msra.mxu0 0.0
    %1489 = vmatprep.subr.mxu0 0.0
    %1490 = vmatpush1.msra.mxu0 0.0
    %1491 = vmatprep.subr.mxu0 0.0
    %1492 = vmatpush1.msra.mxu0 0.0
    %1493 = vmatprep.subr.mxu0 0.0
    %1494 = vmatpush1.msra.mxu0 0.0
    %1495 = vmatprep.subr.mxu0 0.0
    %1496 = vmatpush1.msra.mxu0 0.0
    %1497 = vmatprep.subr.mxu0 0.0
    %1498 = vmatpush1.msra.mxu0 0.0
    %1499 = vmatprep.subr.mxu0 0.0
    %1500 = vmatpush1.msra.mxu0 0.0
    %1501 = vmatprep.subr.mxu0 0.0
    %1502 = vmatpush1.msra.mxu0 0.0
    %1503 = vmatprep.subr.mxu0 0.0
    %1504 = vmatpush1.msra.mxu0 0.0
    %1505 = vmatprep.subr.mxu0 0.0
    %1506 = vmatpush1.msra.mxu0 0.0
    %1507 = vmatprep.subr.mxu0 0.0
    %1508 = vmatpush1.msra.mxu0 0.0
    %1509 = vmatprep.subr.mxu0 0.0
    %1510 = vmatpush1.msra.mxu0 0.0
    %1511 = vmatprep.mubr.f32.mxu0 0.0
    %1512 = vmatmul.mubr.f32.gmra.mrb[0].mxu0 %v1445
    %v1513 = vpop.f32.mrb[0].mxu0
    %v1514 = vadd.f32 0.0, %v1513
    %v1515 = vpop.f32.mrb[0].mxu0
    %1516 = vdwg.mxu0
    %1518 = vrot.lane.b32.xlu0 %v1514, 24
    %v1519 = vpop.permute.xlu0 %1518
    %1521 = vst.msk [vmem:[#allocation2 + $0x8] sm:$0xff] %vm837, %v1519
    %v1522 = vld [vmem:[#allocation2] sm:$0xff]
    %v1523 = vld [vmem:[#allocation2 + $0x8] sm:$0xff]
    %v1524 = vld [vmem:[#allocation8] sm:$0xff]
    %v1525 = vld [vmem:[#allocation8 + $0x8] sm:$0xff]
    %v1526 = vld [vmem:[#allocation8 + $0x10] sm:$0xff]
    %v1527 = vld [vmem:[#allocation8 + $0x18] sm:$0xff]
    %v1528 = vld [vmem:[%s3] sm:$0x1]
    %v1530 = vlaneseq
    %v1531 = vshrl.u32 %v1530, 7
    %v1532 = vsub.s32 0, %v1531
    %v1533 = vrot.slane %v1528, %v1532
    %v1536 = vsel %vm65, %v1522, 0
    %v1539 = vsel %vm65, %v1523, 0
    %1541 = vmatprep.subr.mxu0 0.0
    %1542 = vmatpush1.msra.mxu0 %v1524
    %1543 = vmatprep.subr.mxu0 0.0
    %1544 = vmatpush1.msra.mxu0 %v1525
    %1545 = vmatprep.subr.mxu0 0.0
    %1546 = vmatpush1.msra.mxu0 %v1526
    %1547 = vmatprep.subr.mxu0 0.0
    %1548 = vmatpush1.msra.mxu0 %v1527
    %1549 = vmatprep.subr.mxu0 0.0
    %1550 = vmatpush1.msra.mxu0 0.0
    %1551 = vmatprep.subr.mxu0 0.0
    %1552 = vmatpush1.msra.mxu0 0.0
    %1553 = vmatprep.subr.mxu0 0.0
    %1554 = vmatpush1.msra.mxu0 0.0
    %1555 = vmatprep.subr.mxu0 0.0
    %1556 = vmatpush1.msra.mxu0 0.0
    %1557 = vmatprep.subr.mxu0 0.0
    %1558 = vmatpush1.msra.mxu0 0.0
    %1559 = vmatprep.subr.mxu0 0.0
    %1560 = vmatpush1.msra.mxu0 0.0
    %1561 = vmatprep.subr.mxu0 0.0
    %1562 = vmatpush1.msra.mxu0 0.0
    %1563 = vmatprep.subr.mxu0 0.0
    %1564 = vmatpush1.msra.mxu0 0.0
    %1565 = vmatprep.subr.mxu0 0.0
    %1566 = vmatpush1.msra.mxu0 0.0
    %1567 = vmatprep.subr.mxu0 0.0
    %1568 = vmatpush1.msra.mxu0 0.0
    %1569 = vmatprep.subr.mxu0 0.0
    %1570 = vmatpush1.msra.mxu0 0.0
    %1571 = vmatprep.subr.mxu0 0.0
    %1572 = vmatpush1.msra.mxu0 0.0
    %1573 = vmatprep.subr.mxu0 0.0
    %1574 = vmatpush1.msra.mxu0 0.0
    %1575 = vmatprep.subr.mxu0 0.0
    %1576 = vmatpush1.msra.mxu0 0.0
    %1577 = vmatprep.subr.mxu0 0.0
    %1578 = vmatpush1.msra.mxu0 0.0
    %1579 = vmatprep.subr.mxu0 0.0
    %1580 = vmatpush1.msra.mxu0 0.0
    %1581 = vmatprep.subr.mxu0 0.0
    %1582 = vmatpush1.msra.mxu0 0.0
    %1583 = vmatprep.subr.mxu0 0.0
    %1584 = vmatpush1.msra.mxu0 0.0
    %1585 = vmatprep.subr.mxu0 0.0
    %1586 = vmatpush1.msra.mxu0 0.0
    %1587 = vmatprep.subr.mxu0 0.0
    %1588 = vmatpush1.msra.mxu0 0.0
    %1589 = vmatprep.subr.mxu0 0.0
    %1590 = vmatpush1.msra.mxu0 0.0
    %1591 = vmatprep.subr.mxu0 0.0
    %1592 = vmatpush1.msra.mxu0 0.0
    %1593 = vmatprep.subr.mxu0 0.0
    %1594 = vmatpush1.msra.mxu0 0.0
    %1595 = vmatprep.subr.mxu0 0.0
    %1596 = vmatpush1.msra.mxu0 0.0
    %1597 = vmatprep.subr.mxu0 0.0
    %1598 = vmatpush1.msra.mxu0 0.0
    %1599 = vmatprep.subr.mxu0 0.0
    %1600 = vmatpush1.msra.mxu0 0.0
    %1601 = vmatprep.subr.mxu0 0.0
    %1602 = vmatpush1.msra.mxu0 0.0
    %1603 = vmatprep.subr.mxu0 0.0
    %1604 = vmatpush1.msra.mxu0 0.0
    %1605 = vmatprep.mubr.f32.mxu0 0.0
    %1606 = vmatmul.mubr.f32.gmra.mrb[0].mxu0 %v1536
    %v1607 = vpop.f32.mrb[0].mxu0
    %v1608 = vadd.f32 %v1533, %v1607
    %v1609 = vpop.f32.mrb[0].mxu0
    %1610 = vmatprep.mubr.f32.mxu0 0.0
    %1611 = vmatmul.mubr.f32.gmra.mrb[0].mxu0 %v1539
    %v1612 = vpop.f32.mrb[0].mxu0
    %v1613 = vadd.f32 %v1533, %v1612
    %v1614 = vpop.f32.mrb[0].mxu0
    %1615 = vdwg.mxu0
    %1616 = vst.msk [vmem:[#allocation9] sm:$0xff] %vm65, %v1608
    %1617 = vst.msk [vmem:[#allocation9 + $0x8] sm:$0xff] %vm65, %v1613
    // Predicated region
    $region30: #{tpu_custom_call.1} parent=1 // pred_check
      _
    $region31: #{tpu_custom_call.1} parent=1 // pred_check_branch
      %1619 = sbr.rel (0) target = $region33
    $region32: #{tpu_custom_call.1} parent=1 // pred_region
      %s1621 = ssub.s32 256, 256
      %1622 = vsyncadd [#allocation5], %s1621
      %s1623 = sshll.u32 [#allocation9], 4
      %s1624 = int_to_ptr.vmem [resolvable:$true] %s1623
      %1629 = dma.vmem_to_hbm [thread:$0]  %s1624, 256, %s4, [#allocation5], 128, 128, 8
    $region33: #{tpu_custom_call.1} parent=1 // pred_fallthru
      _
    // Predicated region
    $region34: #{tpu_custom_call.1} parent=1 // pred_check
      _
    $region35: #{tpu_custom_call.1} parent=1 // pred_check_branch
      %1631 = sbr.rel (0) target = $region37
    $region36: #{tpu_custom_call.1} parent=1 // pred_region
      %1632 = dma.done [#allocation5], 256
    $region37: #{tpu_custom_call.1} parent=1 // pred_fallthru
      _
    %1633 = vsyncpa [#allocation4], 1
    %1634 = vsyncpa [#allocation7], 1
    %1635 = vsyncpa [#allocation5], 1

</llo_original>
